<compile_context>
chip_gen: v7x
topology: tpu7x:2x2x1
jax: 0.10.0
libtpu: 0.0.40
codegen_flags: <defaults>
</compile_context>

<pallas_src>
import functools

import jax
import jax.numpy as jnp
from jax.experimental import pallas as pl
from jax.experimental.pallas import tpu as pltpu


def _basic_block_kernel(x_ref, t1_ref, t2_ref, s1_ref, b1_ref, s2_ref, b2_ref,
                        o_ref, *, Nb, H, W, Wp, Cin, Cout):
    # x_ref  : (Nb*H, W*Cin)       f32  lane-dense input rows (NHWC flattened)
    # t1_ref : (3*Wp*Cin,  W*Cout) bf16 block-Toeplitz conv1 weights
    # t2_ref : (3*Wp*Cout, W*Cout) bf16 block-Toeplitz conv2 weights
    # s*/b*  : (1, W*Cout)         f32  folded BN scale/bias tiled over lanes
    # o_ref  : (Nb*H, W*Cout)      f32  lane-dense output rows
    f32 = jnp.float32
    bf16 = jnp.bfloat16
    MR = Nb * H

    x = x_ref[...]                                        # (Nb*H, W*Cin) f32

    def band(act_rows_bf16, C):
        # Zero-pad one activation block to (Nb, H+2, Wp*C) in registers: the
        # left/right halo (and lane-alignment padding) is folded into a single
        # full-width lane concat, the top/bottom halo rows into a sublane
        # concat.  The row-band LHS row (n, y) then holds padded rows
        # y, y+1, y+2 concatenated along lanes -> (Nb*H, 3*Wp*C) bf16.
        act3 = act_rows_bf16.reshape(Nb, H, W * C)
        zl = jnp.zeros((Nb, H, C), bf16)
        zr = jnp.zeros((Nb, H, (Wp - W - 1) * C), bf16)
        rows = jnp.concatenate([zl, act3, zr], axis=-1)        # (Nb, H, Wp*C)
        zrow = jnp.zeros((Nb, 1, Wp * C), bf16)
        padded = jnp.concatenate([zrow, rows, zrow], axis=1)   # (Nb, H+2, Wp*C)
        return jnp.concatenate(
            [padded[:, dy:dy + H, :].reshape(MR, Wp * C) for dy in range(3)],
            axis=-1)                                           # (Nb*H, 3*Wp*C)

    # ---- conv1: ONE block-Toeplitz MXU matmul; bn1 + relu at full lane width.
    acc1 = jnp.dot(band(x.astype(bf16), Cin), t1_ref[...],
                   preferred_element_type=f32)            # (Nb*H, W*Cout) f32
    h = jnp.maximum(acc1 * s1_ref[...] + b1_ref[...], 0.0)

    # ---- conv2: ONE block-Toeplitz MXU matmul; bn2 + identity residual
    # (Cin == Cout, lane layouts match) + relu, all full-lane.
    acc2 = jnp.dot(band(h.astype(bf16), Cout), t2_ref[...],
                   preferred_element_type=f32)            # (Nb*H, W*Cout) f32
    o_ref[...] = jnp.maximum(acc2 * s2_ref[...] + b2_ref[...] + x,
                             0.0).astype(o_ref.dtype)


def _toeplitz_weights(w, W, Wp):
    """(3, 3, Cin, Cout) HWIO -> (3*Wp*Cin, W*Cout) block-Toeplitz matrix, bf16.

    T[(ky*Wp + xp)*Cin + ci, x*Cout + co] = w[ky, xp - x, ci, co] when
    0 <= xp - x <= 2, else 0, so a row-band LHS (padded rows y..y+2) times T
    yields the whole lane-dense output row in one matmul.  The extra zero
    entries are free: the MXU is lane-idle at small C anyway.
    """
    KH, KW, Cin, Cout = w.shape
    xp = jnp.arange(Wp)[:, None, None]
    kx = jnp.arange(KW)[None, :, None]
    xo = jnp.arange(W)[None, None, :]
    ind = (xp == xo + kx).astype(w.dtype)                 # (Wp, KW, W)
    t = jnp.einsum('pkx,qkio->qpixo', ind, w)             # (KH, Wp, Cin, W, Cout)
    return t.reshape(KH * Wp * Cin, W * Cout).astype(jnp.bfloat16)


def basic_block_pallas(x_nchw, w1, w2, scale1, bias1, scale2, bias2,
                       *, batch_block=4):
    """x_nchw: (N, C, H, W) float32.  w*: (3, 3, Cin, Cout) HWIO.

    stride=1, downsample=None, inference-mode (folded) BatchNorm.
    """
    N, C, H, W = x_nchw.shape
    Cin, Cout = w1.shape[2], w1.shape[3]
    assert C == Cin and Cin == Cout, "identity residual requires Cin == Cout"
    # Block-Toeplitz packing is intended for small-C layers only.
    assert W * Cout <= 1024, "block-Toeplitz path sized for small C / W layers"

    # Padded row width: round (W+2)*C up to a whole number of 128-lane tiles
    # (when C divides 128) so every padded-row operand is lane-aligned.
    Wp = W + 2
    if (Wp * C) % 128 != 0 and 128 % C == 0:
        Wp = (-(-(Wp * C) // 128) * 128) // C

    # Batch blocking.  Keep >= 2 grid steps when N >= 2 so the "parallel" axis
    # can shard across both TensorCores on v7x (negligible cost on v5e/v6e).
    Nb = min(batch_block, N)
    if N >= 2:
        Nb = min(Nb, N // 2)
    while N % Nb:   # TODO(synk): pad the batch instead (prime N -> Nb=1 perf cliff)
        Nb -= 1

    # NCHW -> NHWC -> lane-dense rows (n*H + y, x*C + c); free reshape.
    x_rows = jnp.transpose(x_nchw, (0, 2, 3, 1)).reshape(
        N * H, W * Cin).astype(jnp.float32)

    t1 = _toeplitz_weights(w1.astype(jnp.float32), W, Wp)
    t2 = _toeplitz_weights(w2.astype(jnp.float32), W, Wp)
    # BN scale/bias tiled to full lane width (lane index = x*Cout + co).
    s1 = jnp.tile(scale1.astype(jnp.float32), W).reshape(1, W * Cout)
    b1 = jnp.tile(bias1.astype(jnp.float32), W).reshape(1, W * Cout)
    s2 = jnp.tile(scale2.astype(jnp.float32), W).reshape(1, W * Cout)
    b2 = jnp.tile(bias2.astype(jnp.float32), W).reshape(1, W * Cout)

    kernel = functools.partial(_basic_block_kernel,
                               Nb=Nb, H=H, W=W, Wp=Wp, Cin=Cin, Cout=Cout)

    out_rows = pl.pallas_call(
        kernel,
        # Output stays f32 to match the PyTorch module; on v5e consider bf16
        # output if HBM writeback shows up as the bottleneck.
        out_shape=jax.ShapeDtypeStruct((N * H, W * Cout), jnp.float32),
        grid_spec=pltpu.PrefetchScalarGridSpec(
            num_scalar_prefetch=0,
            grid=(N // Nb,),
            in_specs=[
                pl.BlockSpec((Nb * H, W * Cin), lambda b: (b, 0)),
                pl.BlockSpec((3 * Wp * Cin, W * Cout), lambda b: (0, 0)),
                pl.BlockSpec((3 * Wp * Cout, W * Cout), lambda b: (0, 0)),
                pl.BlockSpec((1, W * Cout), lambda b: (0, 0)),
                pl.BlockSpec((1, W * Cout), lambda b: (0, 0)),
                pl.BlockSpec((1, W * Cout), lambda b: (0, 0)),
                pl.BlockSpec((1, W * Cout), lambda b: (0, 0)),
            ],
            # Lane-dense output block: (Nb*H, W*Cout) = (16, 128) at test shape.
            out_specs=pl.BlockSpec((Nb * H, W * Cout), lambda b: (b, 0)),
        ),
        compiler_params=pltpu.CompilerParams(
            dimension_semantics=("parallel",)),
    )(x_rows, t1, t2, s1, b1, s2, b2)

    # (N*H, W*Cout) -> NHWC -> NCHW to match the PyTorch output layout.
    out_nhwc = out_rows.reshape(N, H, W, Cout)
    return jnp.transpose(out_nhwc, (0, 3, 1, 2))


def _reference(x_nchw, w1, w2, s1, b1, s2, b2):
    """Plain-JAX reference of the same (inference-BN) BasicBlock forward.

    Conv inputs are cast to bf16 (f32 accumulation) to match the kernel's MXU
    precision; BN / residual / ReLU are f32.
    """
    xn = jnp.transpose(x_nchw, (0, 2, 3, 1))  # NHWC, f32
    dn = jax.lax.conv_dimension_numbers(xn.shape, w1.shape,
                                        ('NHWC', 'HWIO', 'NHWC'))
    h = jax.lax.conv_general_dilated(
        xn.astype(jnp.bfloat16), w1.astype(jnp.bfloat16), (1, 1), 'SAME',
        dimension_numbers=dn, preferred_element_type=jnp.float32)
    h = jnp.maximum(h * s1 + b1, 0.0)
    o = jax.lax.conv_general_dilated(
        h.astype(jnp.bfloat16), w2.astype(jnp.bfloat16), (1, 1), 'SAME',
        dimension_numbers=dn, preferred_element_type=jnp.float32)
    o = o * s2 + b2
    o = jnp.maximum(o + xn, 0.0)
    return jnp.transpose(o, (0, 3, 1, 2))


if __name__ == "__main__":
    # Small shapes: batch=2, channels=8, spatial=16x16, stride=1, no downsample.
    N, C, H, W = 2, 8, 16, 16
    key = jax.random.PRNGKey(0)
    kx, kw1, kw2, kg1, kb1, km1, kv1, kg2, kb2, km2, kv2 = jax.random.split(key, 11)

    x = jax.random.normal(kx, (N, C, H, W), jnp.float32)

    # Conv weights, HWIO layout (3, 3, Cin, Cout).
    w1 = 0.1 * jax.random.normal(kw1, (3, 3, C, C), jnp.float32)
    w2 = 0.1 * jax.random.normal(kw2, (3, 3, C, C), jnp.float32)

    # BatchNorm parameters (inference mode), folded into scale/bias.
    eps = 1e-5
    gamma1 = 1.0 + 0.1 * jax.random.normal(kg1, (C,), jnp.float32)
    beta1 = 0.1 * jax.random.normal(kb1, (C,), jnp.float32)
    mean1 = 0.1 * jax.random.normal(km1, (C,), jnp.float32)
    var1 = jnp.abs(jax.random.normal(kv1, (C,), jnp.float32)) + 0.5
    gamma2 = 1.0 + 0.1 * jax.random.normal(kg2, (C,), jnp.float32)
    beta2 = 0.1 * jax.random.normal(kb2, (C,), jnp.float32)
    mean2 = 0.1 * jax.random.normal(km2, (C,), jnp.float32)
    var2 = jnp.abs(jax.random.normal(kv2, (C,), jnp.float32)) + 0.5

    scale1 = gamma1 / jnp.sqrt(var1 + eps)
    bias1 = beta1 - mean1 * scale1
    scale2 = gamma2 / jnp.sqrt(var2 + eps)
    bias2 = beta2 - mean2 * scale2

    out = basic_block_pallas(x, w1, w2, scale1, bias1, scale2, bias2)
    out = jax.block_until_ready(out)

    ref = _reference(x, w1, w2, scale1, bias1, scale2, bias2)
    assert out.shape == (N, C, H, W)
    assert jnp.allclose(out, ref, atol=2e-3, rtol=2e-3), "mismatch vs reference"

    print("KERNEL_OK")
</pallas_src>

<mosaic_0001>
module attributes {stable_mosaic.version = 11 : i64} {
  func.func @_basic_block_kernel(%arg0: i32, %arg1: memref<16x128xf32, #tpu.memory_space<vmem>>, %arg2: memref<768x128xbf16, #tpu.memory_space<vmem>>, %arg3: memref<768x128xbf16, #tpu.memory_space<vmem>>, %arg4: memref<1x128xf32, #tpu.memory_space<vmem>>, %arg5: memref<1x128xf32, #tpu.memory_space<vmem>>, %arg6: memref<1x128xf32, #tpu.memory_space<vmem>>, %arg7: memref<1x128xf32, #tpu.memory_space<vmem>>, %arg8: memref<16x128xf32, #tpu.memory_space<vmem>>) attributes {dimension_semantics = [#tpu.dimension_semantics<parallel>], iteration_bounds = array<i64: 2>, scalar_prefetch = 0 : i64, scratch_operands = 0 : i64, tpu.core_type = #tpu.core_type<tc>, window_params = [{transform_indices = @transform_0, window_bounds = array<i64: 16, 128>}, {pipeline_mode = #tpu.pipeline_mode<synchronous>, transform_indices = @transform_1, window_bounds = array<i64: 768, 128>}, {pipeline_mode = #tpu.pipeline_mode<synchronous>, transform_indices = @transform_2, window_bounds = array<i64: 768, 128>}, {pipeline_mode = #tpu.pipeline_mode<synchronous>, transform_indices = @transform_3, window_bounds = array<i64: 1, 128>}, {pipeline_mode = #tpu.pipeline_mode<synchronous>, transform_indices = @transform_4, window_bounds = array<i64: 1, 128>}, {pipeline_mode = #tpu.pipeline_mode<synchronous>, transform_indices = @transform_5, window_bounds = array<i64: 1, 128>}, {pipeline_mode = #tpu.pipeline_mode<synchronous>, transform_indices = @transform_6, window_bounds = array<i64: 1, 128>}, {transform_indices = @transform_7, window_bounds = array<i64: 16, 128>}]} {
    %c0 = arith.constant 0 : index
    %c0_0 = arith.constant 0 : index
    %0 = vector.load %arg1[%c0, %c0_0] : memref<16x128xf32, #tpu.memory_space<vmem>>, vector<16x128xf32>
    %1 = arith.truncf %0 : vector<16x128xf32> to vector<16x128xbf16>
    %2 = vector.shape_cast %1 : vector<16x128xbf16> to vector<1x16x128xbf16>
    %cst = arith.constant 0.000000e+00 : bf16
    %3 = vector.broadcast %cst : bf16 to vector<1x16x8xbf16>
    %cst_1 = arith.constant 0.000000e+00 : bf16
    %4 = vector.broadcast %cst_1 : bf16 to vector<1x16x120xbf16>
    %5 = tpu.concatenate %3, %2, %4 in 2 : vector<1x16x8xbf16>, vector<1x16x128xbf16>, vector<1x16x120xbf16> -> vector<1x16x256xbf16>
    %cst_2 = arith.constant 0.000000e+00 : bf16
    %6 = vector.broadcast %cst_2 : bf16 to vector<1x1x256xbf16>
    %7 = tpu.concatenate %6, %5, %6 in 1 : vector<1x1x256xbf16>, vector<1x16x256xbf16>, vector<1x1x256xbf16> -> vector<1x18x256xbf16>
    %8 = vector.extract_strided_slice %7 {offsets = [0, 0, 0], sizes = [1, 16, 256], strides = [1, 1, 1]} : vector<1x18x256xbf16> to vector<1x16x256xbf16>
    %9 = vector.shape_cast %8 : vector<1x16x256xbf16> to vector<16x256xbf16>
    %10 = vector.extract_strided_slice %7 {offsets = [0, 1, 0], sizes = [1, 16, 256], strides = [1, 1, 1]} : vector<1x18x256xbf16> to vector<1x16x256xbf16>
    %11 = vector.shape_cast %10 : vector<1x16x256xbf16> to vector<16x256xbf16>
    %12 = vector.extract_strided_slice %7 {offsets = [0, 2, 0], sizes = [1, 16, 256], strides = [1, 1, 1]} : vector<1x18x256xbf16> to vector<1x16x256xbf16>
    %13 = vector.shape_cast %12 : vector<1x16x256xbf16> to vector<16x256xbf16>
    %14 = tpu.concatenate %9, %11, %13 in 1 : vector<16x256xbf16>, vector<16x256xbf16>, vector<16x256xbf16> -> vector<16x768xbf16>
    %c0_3 = arith.constant 0 : index
    %c0_4 = arith.constant 0 : index
    %15 = vector.load %arg2[%c0_3, %c0_4] : memref<768x128xbf16, #tpu.memory_space<vmem>>, vector<768x128xbf16>
    %cst_5 = arith.constant dense<0.000000e+00> : vector<16x128xf32>
    %16 = tpu.matmul %14, %15, %cst_5 {dimension_numbers = #tpu.dot_dimension_numbers<[1], [0], [0], [1], [0, 0, 1, 1], [], []>} : vector<16x768xbf16>, vector<768x128xbf16>, vector<16x128xf32> -> vector<16x128xf32>
    %c0_6 = arith.constant 0 : index
    %c0_7 = arith.constant 0 : index
    %17 = vector.load %arg4[%c0_6, %c0_7] : memref<1x128xf32, #tpu.memory_space<vmem>>, vector<1x128xf32>
    %18 = vector.broadcast %17 : vector<1x128xf32> to vector<16x128xf32>
    %19 = arith.mulf %16, %18 : vector<16x128xf32>
    %c0_8 = arith.constant 0 : index
    %c0_9 = arith.constant 0 : index
    %20 = vector.load %arg5[%c0_8, %c0_9] : memref<1x128xf32, #tpu.memory_space<vmem>>, vector<1x128xf32>
    %21 = vector.broadcast %20 : vector<1x128xf32> to vector<16x128xf32>
    %22 = arith.addf %19, %21 : vector<16x128xf32>
    %cst_10 = arith.constant 0.000000e+00 : f32
    %23 = vector.broadcast %cst_10 : f32 to vector<16x128xf32>
    %24 = arith.maximumf %22, %23 : vector<16x128xf32>
    %25 = arith.truncf %24 : vector<16x128xf32> to vector<16x128xbf16>
    %26 = vector.shape_cast %25 : vector<16x128xbf16> to vector<1x16x128xbf16>
    %cst_11 = arith.constant 0.000000e+00 : bf16
    %27 = vector.broadcast %cst_11 : bf16 to vector<1x16x8xbf16>
    %cst_12 = arith.constant 0.000000e+00 : bf16
    %28 = vector.broadcast %cst_12 : bf16 to vector<1x16x120xbf16>
    %29 = tpu.concatenate %27, %26, %28 in 2 : vector<1x16x8xbf16>, vector<1x16x128xbf16>, vector<1x16x120xbf16> -> vector<1x16x256xbf16>
    %cst_13 = arith.constant 0.000000e+00 : bf16
    %30 = vector.broadcast %cst_13 : bf16 to vector<1x1x256xbf16>
    %31 = tpu.concatenate %30, %29, %30 in 1 : vector<1x1x256xbf16>, vector<1x16x256xbf16>, vector<1x1x256xbf16> -> vector<1x18x256xbf16>
    %32 = vector.extract_strided_slice %31 {offsets = [0, 0, 0], sizes = [1, 16, 256], strides = [1, 1, 1]} : vector<1x18x256xbf16> to vector<1x16x256xbf16>
    %33 = vector.shape_cast %32 : vector<1x16x256xbf16> to vector<16x256xbf16>
    %34 = vector.extract_strided_slice %31 {offsets = [0, 1, 0], sizes = [1, 16, 256], strides = [1, 1, 1]} : vector<1x18x256xbf16> to vector<1x16x256xbf16>
    %35 = vector.shape_cast %34 : vector<1x16x256xbf16> to vector<16x256xbf16>
    %36 = vector.extract_strided_slice %31 {offsets = [0, 2, 0], sizes = [1, 16, 256], strides = [1, 1, 1]} : vector<1x18x256xbf16> to vector<1x16x256xbf16>
    %37 = vector.shape_cast %36 : vector<1x16x256xbf16> to vector<16x256xbf16>
    %38 = tpu.concatenate %33, %35, %37 in 1 : vector<16x256xbf16>, vector<16x256xbf16>, vector<16x256xbf16> -> vector<16x768xbf16>
    %c0_14 = arith.constant 0 : index
    %c0_15 = arith.constant 0 : index
    %39 = vector.load %arg3[%c0_14, %c0_15] : memref<768x128xbf16, #tpu.memory_space<vmem>>, vector<768x128xbf16>
    %cst_16 = arith.constant dense<0.000000e+00> : vector<16x128xf32>
    %40 = tpu.matmul %38, %39, %cst_16 {dimension_numbers = #tpu.dot_dimension_numbers<[1], [0], [0], [1], [0, 0, 1, 1], [], []>} : vector<16x768xbf16>, vector<768x128xbf16>, vector<16x128xf32> -> vector<16x128xf32>
    %c0_17 = arith.constant 0 : index
    %c0_18 = arith.constant 0 : index
    %41 = vector.load %arg6[%c0_17, %c0_18] : memref<1x128xf32, #tpu.memory_space<vmem>>, vector<1x128xf32>
    %42 = vector.broadcast %41 : vector<1x128xf32> to vector<16x128xf32>
    %43 = arith.mulf %40, %42 : vector<16x128xf32>
    %c0_19 = arith.constant 0 : index
    %c0_20 = arith.constant 0 : index
    %44 = vector.load %arg7[%c0_19, %c0_20] : memref<1x128xf32, #tpu.memory_space<vmem>>, vector<1x128xf32>
    %45 = vector.broadcast %44 : vector<1x128xf32> to vector<16x128xf32>
    %46 = arith.addf %43, %45 : vector<16x128xf32>
    %47 = arith.addf %46, %0 : vector<16x128xf32>
    %cst_21 = arith.constant 0.000000e+00 : f32
    %48 = vector.broadcast %cst_21 : f32 to vector<16x128xf32>
    %49 = arith.maximumf %47, %48 : vector<16x128xf32>
    %c0_22 = arith.constant 0 : index
    %c0_23 = arith.constant 0 : index
    %50 = vector.load %arg8[%c0_22, %c0_23] : memref<16x128xf32, #tpu.memory_space<vmem>>, vector<16x128xf32>
    tpu.vector_store %arg8[%c0_22, %c0_23], %49 {strides = array<i32>} : memref<16x128xf32, #tpu.memory_space<vmem>>, vector<16x128xf32>,
    return
  }
  func.func @transform_0(%arg0: i32) -> (i32, i32) {
    %c0_i32 = arith.constant 0 : i32
    %c0_i32_0 = arith.constant 0 : i32
    return %arg0, %c0_i32 : i32, i32
  }
  func.func @transform_1(%arg0: i32) -> (i32, i32) {
    %c0_i32 = arith.constant 0 : i32
    %c0_i32_0 = arith.constant 0 : i32
    %c0_i32_1 = arith.constant 0 : i32
    return %c0_i32, %c0_i32_0 : i32, i32
  }
  func.func @transform_2(%arg0: i32) -> (i32, i32) {
    %c0_i32 = arith.constant 0 : i32
    %c0_i32_0 = arith.constant 0 : i32
    %c0_i32_1 = arith.constant 0 : i32
    return %c0_i32, %c0_i32_0 : i32, i32
  }
  func.func @transform_3(%arg0: i32) -> (i32, i32) {
    %c0_i32 = arith.constant 0 : i32
    %c0_i32_0 = arith.constant 0 : i32
    %c0_i32_1 = arith.constant 0 : i32
    return %c0_i32, %c0_i32_0 : i32, i32
  }
  func.func @transform_4(%arg0: i32) -> (i32, i32) {
    %c0_i32 = arith.constant 0 : i32
    %c0_i32_0 = arith.constant 0 : i32
    %c0_i32_1 = arith.constant 0 : i32
    return %c0_i32, %c0_i32_0 : i32, i32
  }
  func.func @transform_5(%arg0: i32) -> (i32, i32) {
    %c0_i32 = arith.constant 0 : i32
    %c0_i32_0 = arith.constant 0 : i32
    %c0_i32_1 = arith.constant 0 : i32
    return %c0_i32, %c0_i32_0 : i32, i32
  }
  func.func @transform_6(%arg0: i32) -> (i32, i32) {
    %c0_i32 = arith.constant 0 : i32
    %c0_i32_0 = arith.constant 0 : i32
    %c0_i32_1 = arith.constant 0 : i32
    return %c0_i32, %c0_i32_0 : i32, i32
  }
  func.func @transform_7(%arg0: i32) -> (i32, i32) {
    %c0_i32 = arith.constant 0 : i32
    %c0_i32_0 = arith.constant 0 : i32
    return %arg0, %c0_i32 : i32, i32
  }
}

</mosaic_0001>

<llo_original>
// kernel: tpu_custom_call.1
$region0: #{tpu_custom_call.1}
  #allocation0 [shape = 'u32[]', space=smem, size = 0x4, offset = 0x4, fixed_abs, tag = 'smem constant byte address 0x4 - core index']
  #allocation1 [shape = 'u32[144,128]{1,0:T(1,128)}', space=vmem, size = 0x12000, scoped, tag = 'internal scratch']
  %s0 = inlined_call_operand.hbm [shape: f32[32,128], index: 0, kind: input, shape index: {}]
  %s1 = inlined_call_operand.hbm [shape: bf16[768,128], index: 1, kind: input, shape index: {}]
  %s2 = inlined_call_operand.hbm [shape: bf16[768,128], index: 2, kind: input, shape index: {}]
  %s3 = inlined_call_operand.vmem [shape: f32[1,128], index: 3, kind: input, shape index: {}]
  %s4 = inlined_call_operand.vmem [shape: f32[1,128], index: 4, kind: input, shape index: {}]
  %s5 = inlined_call_operand.vmem [shape: f32[1,128], index: 5, kind: input, shape index: {}]
  %s6 = inlined_call_operand.vmem [shape: f32[1,128], index: 6, kind: input, shape index: {}]
  %s7 = inlined_call_operand.hbm [shape: f32[32,128], index: 7, kind: output, shape index: {}]
  %s8 = sld [smem:[#allocation0]]
  $region73: #{tpu_custom_call.1} parent=0
    _
  %s10 = ssub.s32 1, %s8
  %s11 = scalar_select 0, %s10, %s8
  $region1: #{tpu_custom_call.1} parent=0
    #allocation2 [shape = 'u8[16384]{0}', space=vmem, size = 0x4000, scoped, tag = 'input window, operand 0']
    #allocation3 [shape = 's32[2]{0}', space=sflag, size = 0x8, scoped, tag = 'scoped memory for tpu_custom_call.1']
    #allocation4 [shape = 's32[2]{0}', space=sflag, size = 0x8, scoped, tag = 'scoped memory for tpu_custom_call.1']
    #allocation5 [shape = 'u8[196608]{0}', space=vmem, size = 0x30000, scoped, tag = 'input window, operand 1, single buffered']
    #allocation6 [shape = 's32[1]{0}', space=sflag, size = 0x4, scoped, tag = 'scoped memory for tpu_custom_call.1']
    #allocation7 [shape = 'u8[196608]{0}', space=vmem, size = 0x30000, scoped, tag = 'input window, operand 2, single buffered']
    #allocation8 [shape = 'u8[16384]{0}', space=vmem, size = 0x4000, scoped, tag = 'output window, operand 0']
    %12 = vsyncpa [#allocation3], 0
    %s13 = scalar_lea.sflag [#allocation3], 1
    %14 = vsyncpa %s13, 0
    %15 = vsyncpa [#allocation6], 0
    %16 = vsyncpa [#allocation4], 0
    %s17 = scalar_lea.sflag [#allocation4], 1
    %18 = vsyncpa %s17, 0
    loop: start=0, step=1, limit=4
    $region2: #{tpu_custom_call.1} parent=1 // loop_pre_header
      _
    $region3: #{tpu_custom_call.1} parent=1 // loop_header
      %s20 = sphi 0, %s24
      %p21 = scmp.ge.s32.totalorder %s20, 4
      %s30 = sphi 0, %s32
      %s33 = sphi 0, %s30
      %s34 = sphi 0, %s33
      %s50 = sphi 0, %s34
      %s54 = sphi 0, %s54
      %s56 = sphi 0, %s54
      %s57 = sphi 0, %s56
      %s71 = sphi 0, %s57
      %s75 = sphi 0, %s75
      %s77 = sphi 0, %s75
      %s78 = sphi 0, %s77
      %s92 = sphi 0, %s78
      %s96 = sphi 0, %s96
      %s98 = sphi 0, %s96
      %s99 = sphi 0, %s98
      %s113 = sphi 0, %s99
      %s117 = sphi 0, %s117
      %s119 = sphi 0, %s117
      %s120 = sphi 0, %s119
      %s134 = sphi 0, %s120
      %s138 = sphi 0, %s138
      %s140 = sphi 0, %s138
      %s141 = sphi 0, %s140
      %s155 = sphi 0, %s141
      %s159 = sphi 0, %s159
      %s161 = sphi 0, %s159
      %s162 = sphi 0, %s161
      %s176 = sphi 0, %s162
      %s182 = sphi 0, %s184
      %s185 = sphi 0, %s182
      %s186 = sphi 0, %s185
      %s202 = sphi 0, %s186
    $region4: #{tpu_custom_call.1} parent=1 // loop_header_branch
      %23 = sbr.rel (%p21) target = $region8
    $region5: #{tpu_custom_call.1} parent=1 // loop_body
      %s25 = ssub.s32 %s20, 1
      %s26 = ssub.s32 %s20, 2
      %s27 = sadd.s32 %s20, 1
      %s28 = ssub.s32 %s20, %s27
      %p29 = scmp.eq.s32.totalorder %s28, 0
      %s31 = sadd.s32 %s30, 1
      %s32 = scalar_select %p29, %s30, %s31
      %p35 = pneg %p29
      %p36 = scmp.eq.s32.totalorder %s20, 1
      %p37 = por %p35, %p36
      %p38 = scmp.ne.s32.totalorder %s30, %s33
      %p39 = scmp.eq.s32.totalorder %s20, 0
      %p40 = por %p38, %p39
      %p41 = scmp.ne.s32.totalorder %s30, %s33
      %p42 = scmp.eq.s32.totalorder %s25, 1
      %p43 = por %p41, %p42
      %p44 = scmp.ne.s32.totalorder %s33, %s34
      %p45 = scmp.eq.s32.totalorder %s25, 0
      %p46 = por %p44, %p45
      %p47 = scmp.ne.s32.totalorder %s33, %s34
      %p48 = scmp.eq.s32.totalorder %s26, 1
      %p49 = por %p47, %p48
      %p51 = scmp.ne.s32.totalorder %s34, %s50
      %p52 = scmp.eq.s32.totalorder %s26, 0
      %p53 = por %p51, %p52
      %s55 = sadd.s32 %s54, 1
      %p58 = scmp.eq.s32.totalorder %s20, 1
      %p59 = scmp.ne.s32.totalorder %s54, %s56
      %p60 = scmp.eq.s32.totalorder %s20, 0
      %p61 = por %p59, %p60
      %p62 = scmp.ne.s32.totalorder %s54, %s56
      %p63 = scmp.eq.s32.totalorder %s25, 1
      %p64 = por %p62, %p63
      %p65 = scmp.ne.s32.totalorder %s56, %s57
      %p66 = scmp.eq.s32.totalorder %s25, 0
      %p67 = por %p65, %p66
      %p68 = scmp.ne.s32.totalorder %s56, %s57
      %p69 = scmp.eq.s32.totalorder %s26, 1
      %p70 = por %p68, %p69
      %p72 = scmp.ne.s32.totalorder %s57, %s71
      %p73 = scmp.eq.s32.totalorder %s26, 0
      %p74 = por %p72, %p73
      %s76 = sadd.s32 %s75, 1
      %p79 = scmp.eq.s32.totalorder %s20, 1
      %p80 = scmp.ne.s32.totalorder %s75, %s77
      %p81 = scmp.eq.s32.totalorder %s20, 0
      %p82 = por %p80, %p81
      %p83 = scmp.ne.s32.totalorder %s75, %s77
      %p84 = scmp.eq.s32.totalorder %s25, 1
      %p85 = por %p83, %p84
      %p86 = scmp.ne.s32.totalorder %s77, %s78
      %p87 = scmp.eq.s32.totalorder %s25, 0
      %p88 = por %p86, %p87
      %p89 = scmp.ne.s32.totalorder %s77, %s78
      %p90 = scmp.eq.s32.totalorder %s26, 1
      %p91 = por %p89, %p90
      %p93 = scmp.ne.s32.totalorder %s78, %s92
      %p94 = scmp.eq.s32.totalorder %s26, 0
      %p95 = por %p93, %p94
      %s97 = sadd.s32 %s96, 1
      %p100 = scmp.eq.s32.totalorder %s20, 1
      %p101 = scmp.ne.s32.totalorder %s96, %s98
      %p102 = scmp.eq.s32.totalorder %s20, 0
      %p103 = por %p101, %p102
      %p104 = scmp.ne.s32.totalorder %s96, %s98
      %p105 = scmp.eq.s32.totalorder %s25, 1
      %p106 = por %p104, %p105
      %p107 = scmp.ne.s32.totalorder %s98, %s99
      %p108 = scmp.eq.s32.totalorder %s25, 0
      %p109 = por %p107, %p108
      %p110 = scmp.ne.s32.totalorder %s98, %s99
      %p111 = scmp.eq.s32.totalorder %s26, 1
      %p112 = por %p110, %p111
      %p114 = scmp.ne.s32.totalorder %s99, %s113
      %p115 = scmp.eq.s32.totalorder %s26, 0
      %p116 = por %p114, %p115
      %s118 = sadd.s32 %s117, 1
      %p121 = scmp.eq.s32.totalorder %s20, 1
      %p122 = scmp.ne.s32.totalorder %s117, %s119
      %p123 = scmp.eq.s32.totalorder %s20, 0
      %p124 = por %p122, %p123
      %p125 = scmp.ne.s32.totalorder %s117, %s119
      %p126 = scmp.eq.s32.totalorder %s25, 1
      %p127 = por %p125, %p126
      %p128 = scmp.ne.s32.totalorder %s119, %s120
      %p129 = scmp.eq.s32.totalorder %s25, 0
      %p130 = por %p128, %p129
      %p131 = scmp.ne.s32.totalorder %s119, %s120
      %p132 = scmp.eq.s32.totalorder %s26, 1
      %p133 = por %p131, %p132
      %p135 = scmp.ne.s32.totalorder %s120, %s134
      %p136 = scmp.eq.s32.totalorder %s26, 0
      %p137 = por %p135, %p136
      %s139 = sadd.s32 %s138, 1
      %p142 = scmp.eq.s32.totalorder %s20, 1
      %p143 = scmp.ne.s32.totalorder %s138, %s140
      %p144 = scmp.eq.s32.totalorder %s20, 0
      %p145 = por %p143, %p144
      %p146 = scmp.ne.s32.totalorder %s138, %s140
      %p147 = scmp.eq.s32.totalorder %s25, 1
      %p148 = por %p146, %p147
      %p149 = scmp.ne.s32.totalorder %s140, %s141
      %p150 = scmp.eq.s32.totalorder %s25, 0
      %p151 = por %p149, %p150
      %p152 = scmp.ne.s32.totalorder %s140, %s141
      %p153 = scmp.eq.s32.totalorder %s26, 1
      %p154 = por %p152, %p153
      %p156 = scmp.ne.s32.totalorder %s141, %s155
      %p157 = scmp.eq.s32.totalorder %s26, 0
      %p158 = por %p156, %p157
      %s160 = sadd.s32 %s159, 1
      %p163 = scmp.eq.s32.totalorder %s20, 1
      %p164 = scmp.ne.s32.totalorder %s159, %s161
      %p165 = scmp.eq.s32.totalorder %s20, 0
      %p166 = por %p164, %p165
      %p167 = scmp.ne.s32.totalorder %s159, %s161
      %p168 = scmp.eq.s32.totalorder %s25, 1
      %p169 = por %p167, %p168
      %p170 = scmp.ne.s32.totalorder %s161, %s162
      %p171 = scmp.eq.s32.totalorder %s25, 0
      %p172 = por %p170, %p171
      %p173 = scmp.ne.s32.totalorder %s161, %s162
      %p174 = scmp.eq.s32.totalorder %s26, 1
      %p175 = por %p173, %p174
      %p177 = scmp.ne.s32.totalorder %s162, %s176
      %p178 = scmp.eq.s32.totalorder %s26, 0
      %p179 = por %p177, %p178
      %s180 = ssub.s32 %s20, %s27
      %p181 = scmp.eq.s32.totalorder %s180, 0
      %s183 = sadd.s32 %s182, 1
      %s184 = scalar_select %p181, %s182, %s183
      %p187 = pneg %p181
      %p188 = scmp.eq.s32.totalorder %s20, 1
      %p189 = por %p187, %p188
      %p190 = scmp.ne.s32.totalorder %s182, %s185
      %p191 = scmp.eq.s32.totalorder %s20, 0
      %p192 = por %p190, %p191
      %p193 = scmp.ne.s32.totalorder %s182, %s185
      %p194 = scmp.eq.s32.totalorder %s25, 1
      %p195 = por %p193, %p194
      %p196 = scmp.ne.s32.totalorder %s185, %s186
      %p197 = scmp.eq.s32.totalorder %s25, 0
      %p198 = por %p196, %p197
      %p199 = scmp.ne.s32.totalorder %s185, %s186
      %p200 = scmp.eq.s32.totalorder %s26, 1
      %p201 = por %p199, %p200
      %p203 = scmp.ne.s32.totalorder %s186, %s202
      %p204 = scmp.eq.s32.totalorder %s26, 0
      %p205 = por %p203, %p204
      %p206 = scmp.le.s32.totalorder 1, %s20
      %p207 = scmp.lt.s32.totalorder %s20, 3
      %p208 = pnand %p206, %p207
      %p209 = pneg %p208
      // Predicated region
      $region9: #{tpu_custom_call.1} parent=5 // pred_check
        _
      $region10: #{tpu_custom_call.1} parent=5 // pred_check_branch
        %211 = sbr.rel (%p208) target = $region12
      $region11: #{tpu_custom_call.1} parent=5 // pred_region
        %s212 = ssub.s32 %s20, 1
        // Predicated region
        $region13: #{tpu_custom_call.1} parent=11 // pred_check
          %p213 = pneg %p67
        $region14: #{tpu_custom_call.1} parent=11 // pred_check_branch
          %215 = sbr.rel (%p213) target = $region16
        $region15: #{tpu_custom_call.1} parent=11 // pred_region
          %s217 = ssub.s32 6144, 6144
          %218 = vsyncadd [#allocation6], %s217
          %s219 = sshll.u32 [#allocation5], 4
          %s220 = int_to_ptr.vmem [resolvable:$true] %s219
          %225 = dma.hbm_to_vmem [thread:$0]  %s1, 6144, %s220, [#allocation6], 64, 64, 4
        $region16: #{tpu_custom_call.1} parent=11 // pred_fallthru
          _
        // Predicated region
        $region17: #{tpu_custom_call.1} parent=11 // pred_check
          %p226 = pneg %p88
        $region18: #{tpu_custom_call.1} parent=11 // pred_check_branch
          %228 = sbr.rel (%p226) target = $region20
        $region19: #{tpu_custom_call.1} parent=11 // pred_region
          %s230 = ssub.s32 6144, 6144
          %231 = vsyncadd [#allocation6], %s230
          %s232 = sshll.u32 [#allocation7], 4
          %s233 = int_to_ptr.vmem [resolvable:$true] %s232
          %238 = dma.hbm_to_vmem [thread:$0]  %s2, 6144, %s233, [#allocation6], 64, 64, 4
        $region20: #{tpu_custom_call.1} parent=11 // pred_fallthru
          _
        // Predicated region
        $region21: #{tpu_custom_call.1} parent=11 // pred_check
          %p239 = pneg %p109
        $region22: #{tpu_custom_call.1} parent=11 // pred_check_branch
          %241 = sbr.rel (%p239) target = $region24
        $region23: #{tpu_custom_call.1} parent=11 // pred_region
          _
        $region24: #{tpu_custom_call.1} parent=11 // pred_fallthru
          _
        // Predicated region
        $region25: #{tpu_custom_call.1} parent=11 // pred_check
          %p242 = pneg %p130
        $region26: #{tpu_custom_call.1} parent=11 // pred_check_branch
          %244 = sbr.rel (%p242) target = $region28
        $region27: #{tpu_custom_call.1} parent=11 // pred_region
          _
        $region28: #{tpu_custom_call.1} parent=11 // pred_fallthru
          _
        // Predicated region
        $region29: #{tpu_custom_call.1} parent=11 // pred_check
          %p245 = pneg %p151
        $region30: #{tpu_custom_call.1} parent=11 // pred_check_branch
          %247 = sbr.rel (%p245) target = $region32
        $region31: #{tpu_custom_call.1} parent=11 // pred_region
          _
        $region32: #{tpu_custom_call.1} parent=11 // pred_fallthru
          _
        // Predicated region
        $region33: #{tpu_custom_call.1} parent=11 // pred_check
          %p248 = pneg %p172
        $region34: #{tpu_custom_call.1} parent=11 // pred_check_branch
          %250 = sbr.rel (%p248) target = $region36
        $region35: #{tpu_custom_call.1} parent=11 // pred_region
          _
        $region36: #{tpu_custom_call.1} parent=11 // pred_fallthru
          _
      $region12: #{tpu_custom_call.1} parent=5 // pred_fallthru
        _
      %p251 = scmp.lt.s32.totalorder %s20, 2
      // Predicated region
      $region37: #{tpu_custom_call.1} parent=5 // pred_check
        %p252 = pneg %p251
      $region38: #{tpu_custom_call.1} parent=5 // pred_check_branch
        %254 = sbr.rel (%p252) target = $region40
      $region39: #{tpu_custom_call.1} parent=5 // pred_region
        // Predicated region
        $region41: #{tpu_custom_call.1} parent=39 // pred_check
          %p255 = pneg %p40
        $region42: #{tpu_custom_call.1} parent=39 // pred_check_branch
          %257 = sbr.rel (%p255) target = $region44
        $region43: #{tpu_custom_call.1} parent=39 // pred_region
          %s258 = sand.u32 %s30, 1
          %s259 = scalar_lea.sflag [#allocation3], %s258
          %s260 = sand.u32 %s30, 1
          %s261 = smul.addr %s260, 16
          %s262 = scalar_lea.vmem [#allocation2], %s261
          %s263 = smul.u32 2, %s20
          %s265 = ssub.s32 256, 256
          %266 = vsyncadd %s259, %s265
          %s267 = smul.addr %s263, 128
          %s268 = scalar_lea.hbm %s0, %s267
          %s269 = sshll.u32 %s262, 4
          %s270 = int_to_ptr.vmem [resolvable:$true] %s269
          %275 = dma.hbm_to_vmem [thread:$0]  %s268, 256, %s270, %s259, 128, 128, 8
        $region44: #{tpu_custom_call.1} parent=39 // pred_fallthru
          _
      $region40: #{tpu_custom_call.1} parent=5 // pred_fallthru
        _
      %p276 = scmp.le.s32.totalorder 1, %s20
      %p277 = scmp.lt.s32.totalorder %s20, 3
      %p278 = pnand %p276, %p277
      %p279 = pneg %p278
      // Predicated region
      $region45: #{tpu_custom_call.1} parent=5 // pred_check
        _
      $region46: #{tpu_custom_call.1} parent=5 // pred_check_branch
        %281 = sbr.rel (%p278) target = $region48
      $region47: #{tpu_custom_call.1} parent=5 // pred_region
        %s282 = ssub.s32 %s20, 1
        %s283 = sand.u32 %s33, 1
        %s284 = scalar_lea.sflag [#allocation3], %s283
        %s285 = sand.u32 %s33, 1
        %s286 = smul.addr %s285, 16
        %s287 = scalar_lea.vmem [#allocation2], %s286
        // Predicated region
        $region49: #{tpu_custom_call.1} parent=47 // pred_check
          %p288 = pneg %p46
        $region50: #{tpu_custom_call.1} parent=47 // pred_check_branch
          %290 = sbr.rel (%p288) target = $region52
        $region51: #{tpu_custom_call.1} parent=47 // pred_region
          %291 = dma.done %s284, 256
        $region52: #{tpu_custom_call.1} parent=47 // pred_fallthru
          _
        // Predicated region
        $region53: #{tpu_custom_call.1} parent=47 // pred_check
          %p292 = pneg %p67
        $region54: #{tpu_custom_call.1} parent=47 // pred_check_branch
          %294 = sbr.rel (%p292) target = $region56
        $region55: #{tpu_custom_call.1} parent=47 // pred_region
          %295 = dma.done [#allocation6], 6144
        $region56: #{tpu_custom_call.1} parent=47 // pred_fallthru
          _
        // Predicated region
        $region57: #{tpu_custom_call.1} parent=47 // pred_check
          %p296 = pneg %p88
        $region58: #{tpu_custom_call.1} parent=47 // pred_check_branch
          %298 = sbr.rel (%p296) target = $region60
        $region59: #{tpu_custom_call.1} parent=47 // pred_region
          %299 = dma.done [#allocation6], 6144
        $region60: #{tpu_custom_call.1} parent=47 // pred_fallthru
          _
        %s300 = sand.u32 %s33, 1
        %s301 = scalar_lea.sflag [#allocation3], %s300
        %s302 = sand.u32 %s33, 1
        %s303 = smul.addr %s302, 16
        %s304 = scalar_lea.vmem [#allocation2], %s303
        %p305 = pneg %p46
        %p306 = pneg %p43
        %p307 = pneg %p67
        %p308 = pneg %p64
        %p309 = pneg %p88
        %p310 = pneg %p85
        %p311 = pneg %p109
        %p312 = pneg %p106
        %p313 = pneg %p130
        %p314 = pneg %p127
        %p315 = pneg %p151
        %p316 = pneg %p148
        %p317 = pneg %p172
        %p318 = pneg %p169
        %p319 = pneg %p198
        %p320 = pneg %p195
        %s321 = sand.u32 %s185, 1
        %s322 = scalar_lea.sflag [#allocation4], %s321
        %s323 = sand.u32 %s185, 1
        %s324 = smul.addr %s323, 16
        %s325 = scalar_lea.vmem [#allocation8], %s324
        %s326 = smul.u32 2, %s25
        %s327 = smul.u32 2, %s25
        %v329 = vld [vmem:[%s287] sm:$0xff]
        %v330 = vld [vmem:[%s287 + $0x8] sm:$0xff]
        %v331 = vpack.c.bf16 %v330, %v329
        %333 = vrot.lane.b32.xlu0 %v331, 8
        %v334 = vpop.permute.xlu0 %333
        %vm335 = vcmask 64512
        %v338 = vsel %vm335, 0, %v334
        %v339 = vsel %vm335, %v334, 0
        %v340 = vshrl.u32 %v338, 16
        %v342 = vrot.slane %v340, 7
        %v343 = vshll.u32 %v338, 16
        %v345 = vor.u32 %v342, %v343
        %v346 = vshrl.u32 %v339, 16
        %v348 = vrot.slane %v346, 7
        %v349 = vshll.u32 %v339, 16
        %v351 = vor.u32 %v348, %v349
        %vm356 = vcmask 1040384
        %vm357 = vsmask.f32 256
        %vm358 = vmand %vm356, %vm357
        %v359 = vsel %vm358, 0, %v345
        %v360 = vsel %vm358, 0, %v351
        %v361 = vsel %vm358, %v342, 0
        %v362 = vsel %vm358, %v348, 0
        %vm363 = vsmask.f32 7424
        %v365 = vshrl.u32 %v359, 16
        %v367 = vshll.u32 %v359, 16
        %v369 = vrot.slane %v367, 1
        %v370 = vor.u32 %v365, %v369
        %v372 = vshll.u32 %v361, 16
        %v374 = vrot.slane %v372, 1
        %v375 = vsel %vm363, %v370, %v374
        %v377 = vshrl.u32 %v360, 16
        %v379 = vshll.u32 %v360, 16
        %v381 = vrot.slane %v379, 1
        %v382 = vor.u32 %v377, %v381
        %v384 = vshll.u32 %v362, 16
        %v386 = vrot.slane %v384, 1
        %v387 = vsel %vm363, %v382, %v386
        %vm394 = vcmask 1046528
        %v395 = vrot.slane %v359, 1
        %v396 = vrot.slane %v361, 1
        %v397 = vsel %vm394, %v395, %v396
        %v398 = vrot.slane %v360, 1
        %v399 = vrot.slane %v362, 1
        %v400 = vsel %vm394, %v398, %v399
        %v403 = vld [vmem:[#allocation5] sm:$0xf]
        %v404 = vld [vmem:[#allocation5 + $0x4] sm:$0xf]
        %v405 = vld [vmem:[#allocation5 + $0x8] sm:$0xf]
        %v406 = vld [vmem:[#allocation5 + $0xc] sm:$0xf]
        %v407 = vld [vmem:[#allocation5 + $0x10] sm:$0xf]
        %v408 = vld [vmem:[#allocation5 + $0x14] sm:$0xf]
        %v409 = vld [vmem:[#allocation5 + $0x18] sm:$0xf]
        %v410 = vld [vmem:[#allocation5 + $0x1c] sm:$0xf]
        %v411 = vld [vmem:[#allocation5 + $0x20] sm:$0xf]
        %v412 = vld [vmem:[#allocation5 + $0x24] sm:$0xf]
        %v413 = vld [vmem:[#allocation5 + $0x28] sm:$0xf]
        %v414 = vld [vmem:[#allocation5 + $0x2c] sm:$0xf]
        %v415 = vld [vmem:[#allocation5 + $0x30] sm:$0xf]
        %v416 = vld [vmem:[#allocation5 + $0x34] sm:$0xf]
        %v417 = vld [vmem:[#allocation5 + $0x38] sm:$0xf]
        %v418 = vld [vmem:[#allocation5 + $0x3c] sm:$0xf]
        %v419 = vld [vmem:[#allocation5 + $0x40] sm:$0xf]
        %v420 = vld [vmem:[#allocation5 + $0x44] sm:$0xf]
        %v421 = vld [vmem:[#allocation5 + $0x48] sm:$0xf]
        %v422 = vld [vmem:[#allocation5 + $0x4c] sm:$0xf]
        %v423 = vld [vmem:[#allocation5 + $0x50] sm:$0xf]
        %v424 = vld [vmem:[#allocation5 + $0x54] sm:$0xf]
        %v425 = vld [vmem:[#allocation5 + $0x58] sm:$0xf]
        %v426 = vld [vmem:[#allocation5 + $0x5c] sm:$0xf]
        %v427 = vld [vmem:[#allocation5 + $0x60] sm:$0xf]
        %v428 = vld [vmem:[#allocation5 + $0x64] sm:$0xf]
        %v429 = vld [vmem:[#allocation5 + $0x68] sm:$0xf]
        %v430 = vld [vmem:[#allocation5 + $0x6c] sm:$0xf]
        %v431 = vld [vmem:[#allocation5 + $0x70] sm:$0xf]
        %v432 = vld [vmem:[#allocation5 + $0x74] sm:$0xf]
        %v433 = vld [vmem:[#allocation5 + $0x78] sm:$0xf]
        %v434 = vld [vmem:[#allocation5 + $0x7c] sm:$0xf]
        %v435 = vld [vmem:[#allocation5 + $0x80] sm:$0xf]
        %v436 = vld [vmem:[#allocation5 + $0x84] sm:$0xf]
        %v437 = vld [vmem:[#allocation5 + $0x88] sm:$0xf]
        %v438 = vld [vmem:[#allocation5 + $0x8c] sm:$0xf]
        %v439 = vld [vmem:[#allocation5 + $0x90] sm:$0xf]
        %v440 = vld [vmem:[#allocation5 + $0x94] sm:$0xf]
        %v441 = vld [vmem:[#allocation5 + $0x98] sm:$0xf]
        %v442 = vld [vmem:[#allocation5 + $0x9c] sm:$0xf]
        %v443 = vld [vmem:[#allocation5 + $0xa0] sm:$0xf]
        %v444 = vld [vmem:[#allocation5 + $0xa4] sm:$0xf]
        %v445 = vld [vmem:[#allocation5 + $0xa8] sm:$0xf]
        %v446 = vld [vmem:[#allocation5 + $0xac] sm:$0xf]
        %v447 = vld [vmem:[#allocation5 + $0xb0] sm:$0xf]
        %v448 = vld [vmem:[#allocation5 + $0xb4] sm:$0xf]
        %v449 = vld [vmem:[#allocation5 + $0xb8] sm:$0xf]
        %v450 = vld [vmem:[#allocation5 + $0xbc] sm:$0xf]
        %v451 = vld [vmem:[#allocation5 + $0xc0] sm:$0xf]
        %v452 = vld [vmem:[#allocation5 + $0xc4] sm:$0xf]
        %v453 = vld [vmem:[#allocation5 + $0xc8] sm:$0xf]
        %v454 = vld [vmem:[#allocation5 + $0xcc] sm:$0xf]
        %v455 = vld [vmem:[#allocation5 + $0xd0] sm:$0xf]
        %v456 = vld [vmem:[#allocation5 + $0xd4] sm:$0xf]
        %v457 = vld [vmem:[#allocation5 + $0xd8] sm:$0xf]
        %v458 = vld [vmem:[#allocation5 + $0xdc] sm:$0xf]
        %v459 = vld [vmem:[#allocation5 + $0xe0] sm:$0xf]
        %v460 = vld [vmem:[#allocation5 + $0xe4] sm:$0xf]
        %v461 = vld [vmem:[#allocation5 + $0xe8] sm:$0xf]
        %v462 = vld [vmem:[#allocation5 + $0xec] sm:$0xf]
        %v463 = vld [vmem:[#allocation5 + $0xf0] sm:$0xf]
        %v464 = vld [vmem:[#allocation5 + $0xf4] sm:$0xf]
        %v465 = vld [vmem:[#allocation5 + $0xf8] sm:$0xf]
        %v466 = vld [vmem:[#allocation5 + $0xfc] sm:$0xf]
        %v467 = vld [vmem:[#allocation5 + $0x100] sm:$0xf]
        %v468 = vld [vmem:[#allocation5 + $0x104] sm:$0xf]
        %v469 = vld [vmem:[#allocation5 + $0x108] sm:$0xf]
        %v470 = vld [vmem:[#allocation5 + $0x10c] sm:$0xf]
        %v471 = vld [vmem:[#allocation5 + $0x110] sm:$0xf]
        %v472 = vld [vmem:[#allocation5 + $0x114] sm:$0xf]
        %v473 = vld [vmem:[#allocation5 + $0x118] sm:$0xf]
        %v474 = vld [vmem:[#allocation5 + $0x11c] sm:$0xf]
        %v475 = vld [vmem:[#allocation5 + $0x120] sm:$0xf]
        %v476 = vld [vmem:[#allocation5 + $0x124] sm:$0xf]
        %v477 = vld [vmem:[#allocation5 + $0x128] sm:$0xf]
        %v478 = vld [vmem:[#allocation5 + $0x12c] sm:$0xf]
        %v479 = vld [vmem:[#allocation5 + $0x130] sm:$0xf]
        %v480 = vld [vmem:[#allocation5 + $0x134] sm:$0xf]
        %v481 = vld [vmem:[#allocation5 + $0x138] sm:$0xf]
        %v482 = vld [vmem:[#allocation5 + $0x13c] sm:$0xf]
        %v483 = vld [vmem:[#allocation5 + $0x140] sm:$0xf]
        %v484 = vld [vmem:[#allocation5 + $0x144] sm:$0xf]
        %v485 = vld [vmem:[#allocation5 + $0x148] sm:$0xf]
        %v486 = vld [vmem:[#allocation5 + $0x14c] sm:$0xf]
        %v487 = vld [vmem:[#allocation5 + $0x150] sm:$0xf]
        %v488 = vld [vmem:[#allocation5 + $0x154] sm:$0xf]
        %v489 = vld [vmem:[#allocation5 + $0x158] sm:$0xf]
        %v490 = vld [vmem:[#allocation5 + $0x15c] sm:$0xf]
        %v491 = vld [vmem:[#allocation5 + $0x160] sm:$0xf]
        %v492 = vld [vmem:[#allocation5 + $0x164] sm:$0xf]
        %v493 = vld [vmem:[#allocation5 + $0x168] sm:$0xf]
        %v494 = vld [vmem:[#allocation5 + $0x16c] sm:$0xf]
        %v495 = vld [vmem:[#allocation5 + $0x170] sm:$0xf]
        %v496 = vld [vmem:[#allocation5 + $0x174] sm:$0xf]
        %v497 = vld [vmem:[#allocation5 + $0x178] sm:$0xf]
        %v498 = vld [vmem:[#allocation5 + $0x17c] sm:$0xf]
        %v595 = vunpack.c.l.b16 %v403
        %v596 = vunpack.c.l.b16 %v404
        %v597 = vunpack.c.l.b16 %v405
        %v598 = vunpack.c.l.b16 %v406
        %v599 = vunpack.c.l.b16 %v407
        %v600 = vunpack.c.l.b16 %v408
        %v601 = vunpack.c.l.b16 %v409
        %v602 = vunpack.c.l.b16 %v410
        %v603 = vunpack.c.l.b16 %v411
        %v604 = vunpack.c.l.b16 %v412
        %v605 = vunpack.c.l.b16 %v413
        %v606 = vunpack.c.l.b16 %v414
        %v607 = vunpack.c.l.b16 %v415
        %v608 = vunpack.c.l.b16 %v416
        %v609 = vunpack.c.l.b16 %v417
        %v610 = vunpack.c.l.b16 %v418
        %v611 = vunpack.c.l.b16 %v419
        %v612 = vunpack.c.l.b16 %v420
        %v613 = vunpack.c.l.b16 %v421
        %v614 = vunpack.c.l.b16 %v422
        %v615 = vunpack.c.l.b16 %v423
        %v616 = vunpack.c.l.b16 %v424
        %v617 = vunpack.c.l.b16 %v425
        %v618 = vunpack.c.l.b16 %v426
        %v619 = vunpack.c.l.b16 %v427
        %v620 = vunpack.c.l.b16 %v428
        %v621 = vunpack.c.l.b16 %v429
        %v622 = vunpack.c.l.b16 %v430
        %v623 = vunpack.c.l.b16 %v431
        %v624 = vunpack.c.l.b16 %v432
        %v625 = vunpack.c.l.b16 %v433
        %v626 = vunpack.c.l.b16 %v434
        %v627 = vunpack.c.l.b16 %v435
        %v628 = vunpack.c.l.b16 %v436
        %v629 = vunpack.c.l.b16 %v437
        %v630 = vunpack.c.l.b16 %v438
        %v631 = vunpack.c.l.b16 %v439
        %v632 = vunpack.c.l.b16 %v440
        %v633 = vunpack.c.l.b16 %v441
        %v634 = vunpack.c.l.b16 %v442
        %v635 = vunpack.c.l.b16 %v443
        %v636 = vunpack.c.l.b16 %v444
        %v637 = vunpack.c.l.b16 %v445
        %v638 = vunpack.c.l.b16 %v446
        %v639 = vunpack.c.l.b16 %v447
        %v640 = vunpack.c.l.b16 %v448
        %v641 = vunpack.c.l.b16 %v449
        %v642 = vunpack.c.l.b16 %v450
        %v643 = vunpack.c.l.b16 %v451
        %v644 = vunpack.c.l.b16 %v452
        %v645 = vunpack.c.l.b16 %v453
        %v646 = vunpack.c.l.b16 %v454
        %v647 = vunpack.c.l.b16 %v455
        %v648 = vunpack.c.l.b16 %v456
        %v649 = vunpack.c.l.b16 %v457
        %v650 = vunpack.c.l.b16 %v458
        %v651 = vunpack.c.l.b16 %v459
        %v652 = vunpack.c.l.b16 %v460
        %v653 = vunpack.c.l.b16 %v461
        %v654 = vunpack.c.l.b16 %v462
        %v655 = vunpack.c.l.b16 %v463
        %v656 = vunpack.c.l.b16 %v464
        %v657 = vunpack.c.l.b16 %v465
        %v658 = vunpack.c.l.b16 %v466
        %v659 = vunpack.c.l.b16 %v467
        %v660 = vunpack.c.l.b16 %v468
        %v661 = vunpack.c.l.b16 %v469
        %v662 = vunpack.c.l.b16 %v470
        %v663 = vunpack.c.l.b16 %v471
        %v664 = vunpack.c.l.b16 %v472
        %v665 = vunpack.c.l.b16 %v473
        %v666 = vunpack.c.l.b16 %v474
        %v667 = vunpack.c.l.b16 %v475
        %v668 = vunpack.c.l.b16 %v476
        %v669 = vunpack.c.l.b16 %v477
        %v670 = vunpack.c.l.b16 %v478
        %v671 = vunpack.c.l.b16 %v479
        %v672 = vunpack.c.l.b16 %v480
        %v673 = vunpack.c.l.b16 %v481
        %v674 = vunpack.c.l.b16 %v482
        %v675 = vunpack.c.l.b16 %v483
        %v676 = vunpack.c.l.b16 %v484
        %v677 = vunpack.c.l.b16 %v485
        %v678 = vunpack.c.l.b16 %v486
        %v679 = vunpack.c.l.b16 %v487
        %v680 = vunpack.c.l.b16 %v488
        %v681 = vunpack.c.l.b16 %v489
        %v682 = vunpack.c.l.b16 %v490
        %v683 = vunpack.c.l.b16 %v491
        %v684 = vunpack.c.l.b16 %v492
        %v685 = vunpack.c.l.b16 %v493
        %v686 = vunpack.c.l.b16 %v494
        %v687 = vunpack.c.l.b16 %v495
        %v688 = vunpack.c.l.b16 %v496
        %v689 = vunpack.c.l.b16 %v497
        %v690 = vunpack.c.l.b16 %v498
        %v691 = vpack.c.b16 %v596, %v595
        %v692 = vpack.c.b16 %v598, %v597
        %v693 = vpack.c.b16 %v600, %v599
        %v694 = vpack.c.b16 %v602, %v601
        %v695 = vpack.c.b16 %v604, %v603
        %v696 = vpack.c.b16 %v606, %v605
        %v697 = vpack.c.b16 %v608, %v607
        %v698 = vpack.c.b16 %v610, %v609
        %v699 = vpack.c.b16 %v612, %v611
        %v700 = vpack.c.b16 %v614, %v613
        %v701 = vpack.c.b16 %v616, %v615
        %v702 = vpack.c.b16 %v618, %v617
        %v703 = vpack.c.b16 %v620, %v619
        %v704 = vpack.c.b16 %v622, %v621
        %v705 = vpack.c.b16 %v624, %v623
        %v706 = vpack.c.b16 %v626, %v625
        %v707 = vpack.c.b16 %v628, %v627
        %v708 = vpack.c.b16 %v630, %v629
        %v709 = vpack.c.b16 %v632, %v631
        %v710 = vpack.c.b16 %v634, %v633
        %v711 = vpack.c.b16 %v636, %v635
        %v712 = vpack.c.b16 %v638, %v637
        %v713 = vpack.c.b16 %v640, %v639
        %v714 = vpack.c.b16 %v642, %v641
        %v715 = vpack.c.b16 %v644, %v643
        %v716 = vpack.c.b16 %v646, %v645
        %v717 = vpack.c.b16 %v648, %v647
        %v718 = vpack.c.b16 %v650, %v649
        %v719 = vpack.c.b16 %v652, %v651
        %v720 = vpack.c.b16 %v654, %v653
        %v721 = vpack.c.b16 %v656, %v655
        %v722 = vpack.c.b16 %v658, %v657
        %v723 = vpack.c.b16 %v660, %v659
        %v724 = vpack.c.b16 %v662, %v661
        %v725 = vpack.c.b16 %v664, %v663
        %v726 = vpack.c.b16 %v666, %v665
        %v727 = vpack.c.b16 %v668, %v667
        %v728 = vpack.c.b16 %v670, %v669
        %v729 = vpack.c.b16 %v672, %v671
        %v730 = vpack.c.b16 %v674, %v673
        %v731 = vpack.c.b16 %v676, %v675
        %v732 = vpack.c.b16 %v678, %v677
        %v733 = vpack.c.b16 %v680, %v679
        %v734 = vpack.c.b16 %v682, %v681
        %v735 = vpack.c.b16 %v684, %v683
        %v736 = vpack.c.b16 %v686, %v685
        %v737 = vpack.c.b16 %v688, %v687
        %v738 = vpack.c.b16 %v690, %v689
        %787 = vmatprep.subr.bf16.mxu0 0
        %788 = vmatpush1.bf16.msra.mxu0 %v691
        %789 = vmatprep.subr.bf16.mxu0 0
        %790 = vmatpush1.bf16.msra.mxu0 %v692
        %791 = vmatprep.subr.bf16.mxu0 0
        %792 = vmatpush1.bf16.msra.mxu0 %v693
        %793 = vmatprep.subr.bf16.mxu0 0
        %794 = vmatpush1.bf16.msra.mxu0 %v694
        %795 = vmatprep.subr.bf16.mxu0 0
        %796 = vmatpush1.bf16.msra.mxu0 %v695
        %797 = vmatprep.subr.bf16.mxu0 0
        %798 = vmatpush1.bf16.msra.mxu0 %v696
        %799 = vmatprep.subr.bf16.mxu0 0
        %800 = vmatpush1.bf16.msra.mxu0 %v697
        %801 = vmatprep.subr.bf16.mxu0 0
        %802 = vmatpush1.bf16.msra.mxu0 %v698
        %803 = vmatprep.subr.bf16.mxu0 0
        %804 = vmatpush1.bf16.msra.mxu0 %v699
        %805 = vmatprep.subr.bf16.mxu0 0
        %806 = vmatpush1.bf16.msra.mxu0 %v700
        %807 = vmatprep.subr.bf16.mxu0 0
        %808 = vmatpush1.bf16.msra.mxu0 %v701
        %809 = vmatprep.subr.bf16.mxu0 0
        %810 = vmatpush1.bf16.msra.mxu0 %v702
        %811 = vmatprep.subr.bf16.mxu0 0
        %812 = vmatpush1.bf16.msra.mxu0 %v703
        %813 = vmatprep.subr.bf16.mxu0 0
        %814 = vmatpush1.bf16.msra.mxu0 %v704
        %815 = vmatprep.subr.bf16.mxu0 0
        %816 = vmatpush1.bf16.msra.mxu0 %v705
        %817 = vmatprep.subr.bf16.mxu0 0
        %818 = vmatpush1.bf16.msra.mxu0 %v706
        %819 = vmatprep.mubr.bf16.mxu0 %v360
        %820 = vmatmul.mubr.bf16.gmra.mrb[0].mxu0 %v359
        %v821 = vpop.f32.mrb[0].mxu0
        %v822 = vadd.f32 0.0, %v821
        %v823 = vpop.f32.mrb[0].mxu0
        %v824 = vpop.f32.mrb[0].mxu0
        %v825 = vadd.f32 0.0, %v824
        %v826 = vpop.f32.mrb[0].mxu0
        %827 = vdwg.mxu0
        %828 = vmatprep.subr.bf16.mxu0 0
        %829 = vmatpush1.bf16.msra.mxu0 %v707
        %830 = vmatprep.subr.bf16.mxu0 0
        %831 = vmatpush1.bf16.msra.mxu0 %v708
        %832 = vmatprep.subr.bf16.mxu0 0
        %833 = vmatpush1.bf16.msra.mxu0 %v709
        %834 = vmatprep.subr.bf16.mxu0 0
        %835 = vmatpush1.bf16.msra.mxu0 %v710
        %836 = vmatprep.subr.bf16.mxu0 0
        %837 = vmatpush1.bf16.msra.mxu0 %v711
        %838 = vmatprep.subr.bf16.mxu0 0
        %839 = vmatpush1.bf16.msra.mxu0 %v712
        %840 = vmatprep.subr.bf16.mxu0 0
        %841 = vmatpush1.bf16.msra.mxu0 %v713
        %842 = vmatprep.subr.bf16.mxu0 0
        %843 = vmatpush1.bf16.msra.mxu0 %v714
        %844 = vmatprep.subr.bf16.mxu0 0
        %845 = vmatpush1.bf16.msra.mxu0 %v715
        %846 = vmatprep.subr.bf16.mxu0 0
        %847 = vmatpush1.bf16.msra.mxu0 %v716
        %848 = vmatprep.subr.bf16.mxu0 0
        %849 = vmatpush1.bf16.msra.mxu0 %v717
        %850 = vmatprep.subr.bf16.mxu0 0
        %851 = vmatpush1.bf16.msra.mxu0 %v718
        %852 = vmatprep.subr.bf16.mxu0 0
        %853 = vmatpush1.bf16.msra.mxu0 %v719
        %854 = vmatprep.subr.bf16.mxu0 0
        %855 = vmatpush1.bf16.msra.mxu0 %v720
        %856 = vmatprep.subr.bf16.mxu0 0
        %857 = vmatpush1.bf16.msra.mxu0 %v721
        %858 = vmatprep.subr.bf16.mxu0 0
        %859 = vmatpush1.bf16.msra.mxu0 %v722
        %860 = vmatprep.mubr.bf16.mxu0 %v387
        %861 = vmatmul.mubr.bf16.gmra.mrb[0].mxu0 %v375
        %v862 = vpop.f32.mrb[0].mxu0
        %v863 = vadd.f32 %v822, %v862
        %v864 = vpop.f32.mrb[0].mxu0
        %v865 = vpop.f32.mrb[0].mxu0
        %v866 = vadd.f32 %v825, %v865
        %v867 = vpop.f32.mrb[0].mxu0
        %868 = vdwg.mxu0
        %869 = vmatprep.subr.bf16.mxu0 0
        %870 = vmatpush1.bf16.msra.mxu0 %v723
        %871 = vmatprep.subr.bf16.mxu0 0
        %872 = vmatpush1.bf16.msra.mxu0 %v724
        %873 = vmatprep.subr.bf16.mxu0 0
        %874 = vmatpush1.bf16.msra.mxu0 %v725
        %875 = vmatprep.subr.bf16.mxu0 0
        %876 = vmatpush1.bf16.msra.mxu0 %v726
        %877 = vmatprep.subr.bf16.mxu0 0
        %878 = vmatpush1.bf16.msra.mxu0 %v727
        %879 = vmatprep.subr.bf16.mxu0 0
        %880 = vmatpush1.bf16.msra.mxu0 %v728
        %881 = vmatprep.subr.bf16.mxu0 0
        %882 = vmatpush1.bf16.msra.mxu0 %v729
        %883 = vmatprep.subr.bf16.mxu0 0
        %884 = vmatpush1.bf16.msra.mxu0 %v730
        %885 = vmatprep.subr.bf16.mxu0 0
        %886 = vmatpush1.bf16.msra.mxu0 %v731
        %887 = vmatprep.subr.bf16.mxu0 0
        %888 = vmatpush1.bf16.msra.mxu0 %v732
        %889 = vmatprep.subr.bf16.mxu0 0
        %890 = vmatpush1.bf16.msra.mxu0 %v733
        %891 = vmatprep.subr.bf16.mxu0 0
        %892 = vmatpush1.bf16.msra.mxu0 %v734
        %893 = vmatprep.subr.bf16.mxu0 0
        %894 = vmatpush1.bf16.msra.mxu0 %v735
        %895 = vmatprep.subr.bf16.mxu0 0
        %896 = vmatpush1.bf16.msra.mxu0 %v736
        %897 = vmatprep.subr.bf16.mxu0 0
        %898 = vmatpush1.bf16.msra.mxu0 %v737
        %899 = vmatprep.subr.bf16.mxu0 0
        %900 = vmatpush1.bf16.msra.mxu0 %v738
        %901 = vmatprep.mubr.bf16.mxu0 %v400
        %902 = vmatmul.mubr.bf16.gmra.mrb[0].mxu0 %v397
        %v903 = vpop.f32.mrb[0].mxu0
        %v904 = vadd.f32 %v863, %v903
        %v905 = vpop.f32.mrb[0].mxu0
        %v906 = vpop.f32.mrb[0].mxu0
        %v907 = vadd.f32 %v866, %v906
        %v908 = vpop.f32.mrb[0].mxu0
        %909 = vdwg.mxu0
        %v910 = vld [vmem:[%s3] sm:$0x1]
        %v912 = vlaneseq
        %v913 = vshrl.u32 %v912, 7
        %v914 = vsub.s32 0, %v913
        %v915 = vrot.slane %v910, %v914
        %v917 = vmul.f32 %v904, %v915
        %v918 = vmul.f32 %v907, %v915
        %v919 = vld [vmem:[%s4] sm:$0x1]
        %v921 = vlaneseq
        %v922 = vshrl.u32 %v921, 7
        %v923 = vsub.s32 0, %v922
        %v924 = vrot.slane %v919, %v923
        %v926 = vadd.f32 %v917, %v924
        %v927 = vadd.f32 %v918, %v924
        %v928 = vmax.f32 %v926, 0.0
        %v929 = vmax.f32 %v927, 0.0
        %v930 = vpack.c.bf16 %v929, %v928
        %932 = vrot.lane.b32.xlu0 %v930, 8
        %v933 = vpop.permute.xlu0 %932
        %v935 = vsel %vm335, 0, %v933
        %v936 = vsel %vm335, %v933, 0
        %v937 = vshrl.u32 %v935, 16
        %v939 = vrot.slane %v937, 7
        %v940 = vshll.u32 %v935, 16
        %v942 = vor.u32 %v939, %v940
        %v943 = vshrl.u32 %v936, 16
        %v945 = vrot.slane %v943, 7
        %v946 = vshll.u32 %v936, 16
        %v948 = vor.u32 %v945, %v946
        %v953 = vsel %vm358, 0, %v942
        %v954 = vsel %vm358, 0, %v948
        %v955 = vsel %vm358, %v939, 0
        %v956 = vsel %vm358, %v945, 0
        %v958 = vshrl.u32 %v953, 16
        %v960 = vshll.u32 %v953, 16
        %v962 = vrot.slane %v960, 1
        %v963 = vor.u32 %v958, %v962
        %v965 = vshll.u32 %v955, 16
        %v967 = vrot.slane %v965, 1
        %v968 = vsel %vm363, %v963, %v967
        %v970 = vshrl.u32 %v954, 16
        %v972 = vshll.u32 %v954, 16
        %v974 = vrot.slane %v972, 1
        %v975 = vor.u32 %v970, %v974
        %v977 = vshll.u32 %v956, 16
        %v979 = vrot.slane %v977, 1
        %v980 = vsel %vm363, %v975, %v979
        %v987 = vrot.slane %v953, 1
        %v988 = vrot.slane %v955, 1
        %v989 = vsel %vm394, %v987, %v988
        %v990 = vrot.slane %v954, 1
        %v991 = vrot.slane %v956, 1
        %v992 = vsel %vm394, %v990, %v991
        %v995 = vld [vmem:[#allocation7] sm:$0xf]
        %v996 = vld [vmem:[#allocation7 + $0x4] sm:$0xf]
        %v997 = vld [vmem:[#allocation7 + $0x8] sm:$0xf]
        %v998 = vld [vmem:[#allocation7 + $0xc] sm:$0xf]
        %v999 = vld [vmem:[#allocation7 + $0x10] sm:$0xf]
        %v1000 = vld [vmem:[#allocation7 + $0x14] sm:$0xf]
        %v1001 = vld [vmem:[#allocation7 + $0x18] sm:$0xf]
        %v1002 = vld [vmem:[#allocation7 + $0x1c] sm:$0xf]
        %v1003 = vld [vmem:[#allocation7 + $0x20] sm:$0xf]
        %v1004 = vld [vmem:[#allocation7 + $0x24] sm:$0xf]
        %v1005 = vld [vmem:[#allocation7 + $0x28] sm:$0xf]
        %v1006 = vld [vmem:[#allocation7 + $0x2c] sm:$0xf]
        %v1007 = vld [vmem:[#allocation7 + $0x30] sm:$0xf]
        %v1008 = vld [vmem:[#allocation7 + $0x34] sm:$0xf]
        %v1009 = vld [vmem:[#allocation7 + $0x38] sm:$0xf]
        %v1010 = vld [vmem:[#allocation7 + $0x3c] sm:$0xf]
        %v1011 = vld [vmem:[#allocation7 + $0x40] sm:$0xf]
        %v1012 = vld [vmem:[#allocation7 + $0x44] sm:$0xf]
        %v1013 = vld [vmem:[#allocation7 + $0x48] sm:$0xf]
        %v1014 = vld [vmem:[#allocation7 + $0x4c] sm:$0xf]
        %v1015 = vld [vmem:[#allocation7 + $0x50] sm:$0xf]
        %v1016 = vld [vmem:[#allocation7 + $0x54] sm:$0xf]
        %v1017 = vld [vmem:[#allocation7 + $0x58] sm:$0xf]
        %v1018 = vld [vmem:[#allocation7 + $0x5c] sm:$0xf]
        %v1019 = vld [vmem:[#allocation7 + $0x60] sm:$0xf]
        %v1020 = vld [vmem:[#allocation7 + $0x64] sm:$0xf]
        %v1021 = vld [vmem:[#allocation7 + $0x68] sm:$0xf]
        %v1022 = vld [vmem:[#allocation7 + $0x6c] sm:$0xf]
        %v1023 = vld [vmem:[#allocation7 + $0x70] sm:$0xf]
        %v1024 = vld [vmem:[#allocation7 + $0x74] sm:$0xf]
        %v1025 = vld [vmem:[#allocation7 + $0x78] sm:$0xf]
        %v1026 = vld [vmem:[#allocation7 + $0x7c] sm:$0xf]
        %v1027 = vld [vmem:[#allocation7 + $0x80] sm:$0xf]
        %v1028 = vld [vmem:[#allocation7 + $0x84] sm:$0xf]
        %v1029 = vld [vmem:[#allocation7 + $0x88] sm:$0xf]
        %v1030 = vld [vmem:[#allocation7 + $0x8c] sm:$0xf]
        %v1031 = vld [vmem:[#allocation7 + $0x90] sm:$0xf]
        %v1032 = vld [vmem:[#allocation7 + $0x94] sm:$0xf]
        %v1033 = vld [vmem:[#allocation7 + $0x98] sm:$0xf]
        %v1034 = vld [vmem:[#allocation7 + $0x9c] sm:$0xf]
        %v1035 = vld [vmem:[#allocation7 + $0xa0] sm:$0xf]
        %v1036 = vld [vmem:[#allocation7 + $0xa4] sm:$0xf]
        %v1037 = vld [vmem:[#allocation7 + $0xa8] sm:$0xf]
        %v1038 = vld [vmem:[#allocation7 + $0xac] sm:$0xf]
        %v1039 = vld [vmem:[#allocation7 + $0xb0] sm:$0xf]
        %v1040 = vld [vmem:[#allocation7 + $0xb4] sm:$0xf]
        %v1041 = vld [vmem:[#allocation7 + $0xb8] sm:$0xf]
        %v1042 = vld [vmem:[#allocation7 + $0xbc] sm:$0xf]
        %v1043 = vld [vmem:[#allocation7 + $0xc0] sm:$0xf]
        %v1044 = vld [vmem:[#allocation7 + $0xc4] sm:$0xf]
        %v1045 = vld [vmem:[#allocation7 + $0xc8] sm:$0xf]
        %v1046 = vld [vmem:[#allocation7 + $0xcc] sm:$0xf]
        %v1047 = vld [vmem:[#allocation7 + $0xd0] sm:$0xf]
        %v1048 = vld [vmem:[#allocation7 + $0xd4] sm:$0xf]
        %v1049 = vld [vmem:[#allocation7 + $0xd8] sm:$0xf]
        %v1050 = vld [vmem:[#allocation7 + $0xdc] sm:$0xf]
        %v1051 = vld [vmem:[#allocation7 + $0xe0] sm:$0xf]
        %v1052 = vld [vmem:[#allocation7 + $0xe4] sm:$0xf]
        %v1053 = vld [vmem:[#allocation7 + $0xe8] sm:$0xf]
        %v1054 = vld [vmem:[#allocation7 + $0xec] sm:$0xf]
        %v1055 = vld [vmem:[#allocation7 + $0xf0] sm:$0xf]
        %v1056 = vld [vmem:[#allocation7 + $0xf4] sm:$0xf]
        %v1057 = vld [vmem:[#allocation7 + $0xf8] sm:$0xf]
        %v1058 = vld [vmem:[#allocation7 + $0xfc] sm:$0xf]
        %v1059 = vld [vmem:[#allocation7 + $0x100] sm:$0xf]
        %v1060 = vld [vmem:[#allocation7 + $0x104] sm:$0xf]
        %v1061 = vld [vmem:[#allocation7 + $0x108] sm:$0xf]
        %v1062 = vld [vmem:[#allocation7 + $0x10c] sm:$0xf]
        %v1063 = vld [vmem:[#allocation7 + $0x110] sm:$0xf]
        %v1064 = vld [vmem:[#allocation7 + $0x114] sm:$0xf]
        %v1065 = vld [vmem:[#allocation7 + $0x118] sm:$0xf]
        %v1066 = vld [vmem:[#allocation7 + $0x11c] sm:$0xf]
        %v1067 = vld [vmem:[#allocation7 + $0x120] sm:$0xf]
        %v1068 = vld [vmem:[#allocation7 + $0x124] sm:$0xf]
        %v1069 = vld [vmem:[#allocation7 + $0x128] sm:$0xf]
        %v1070 = vld [vmem:[#allocation7 + $0x12c] sm:$0xf]
        %v1071 = vld [vmem:[#allocation7 + $0x130] sm:$0xf]
        %v1072 = vld [vmem:[#allocation7 + $0x134] sm:$0xf]
        %v1073 = vld [vmem:[#allocation7 + $0x138] sm:$0xf]
        %v1074 = vld [vmem:[#allocation7 + $0x13c] sm:$0xf]
        %v1075 = vld [vmem:[#allocation7 + $0x140] sm:$0xf]
        %v1076 = vld [vmem:[#allocation7 + $0x144] sm:$0xf]
        %v1077 = vld [vmem:[#allocation7 + $0x148] sm:$0xf]
        %v1078 = vld [vmem:[#allocation7 + $0x14c] sm:$0xf]
        %v1079 = vld [vmem:[#allocation7 + $0x150] sm:$0xf]
        %v1080 = vld [vmem:[#allocation7 + $0x154] sm:$0xf]
        %v1081 = vld [vmem:[#allocation7 + $0x158] sm:$0xf]
        %v1082 = vld [vmem:[#allocation7 + $0x15c] sm:$0xf]
        %v1083 = vld [vmem:[#allocation7 + $0x160] sm:$0xf]
        %v1084 = vld [vmem:[#allocation7 + $0x164] sm:$0xf]
        %v1085 = vld [vmem:[#allocation7 + $0x168] sm:$0xf]
        %v1086 = vld [vmem:[#allocation7 + $0x16c] sm:$0xf]
        %v1087 = vld [vmem:[#allocation7 + $0x170] sm:$0xf]
        %v1088 = vld [vmem:[#allocation7 + $0x174] sm:$0xf]
        %v1089 = vld [vmem:[#allocation7 + $0x178] sm:$0xf]
        %v1090 = vld [vmem:[#allocation7 + $0x17c] sm:$0xf]
        %v1187 = vunpack.c.l.b16 %v995
        %v1188 = vunpack.c.l.b16 %v996
        %v1189 = vunpack.c.l.b16 %v997
        %v1190 = vunpack.c.l.b16 %v998
        %v1191 = vunpack.c.l.b16 %v999
        %v1192 = vunpack.c.l.b16 %v1000
        %v1193 = vunpack.c.l.b16 %v1001
        %v1194 = vunpack.c.l.b16 %v1002
        %v1195 = vunpack.c.l.b16 %v1003
        %v1196 = vunpack.c.l.b16 %v1004
        %v1197 = vunpack.c.l.b16 %v1005
        %v1198 = vunpack.c.l.b16 %v1006
        %v1199 = vunpack.c.l.b16 %v1007
        %v1200 = vunpack.c.l.b16 %v1008
        %v1201 = vunpack.c.l.b16 %v1009
        %v1202 = vunpack.c.l.b16 %v1010
        %v1203 = vunpack.c.l.b16 %v1011
        %v1204 = vunpack.c.l.b16 %v1012
        %v1205 = vunpack.c.l.b16 %v1013
        %v1206 = vunpack.c.l.b16 %v1014
        %v1207 = vunpack.c.l.b16 %v1015
        %v1208 = vunpack.c.l.b16 %v1016
        %v1209 = vunpack.c.l.b16 %v1017
        %v1210 = vunpack.c.l.b16 %v1018
        %v1211 = vunpack.c.l.b16 %v1019
        %v1212 = vunpack.c.l.b16 %v1020
        %v1213 = vunpack.c.l.b16 %v1021
        %v1214 = vunpack.c.l.b16 %v1022
        %v1215 = vunpack.c.l.b16 %v1023
        %v1216 = vunpack.c.l.b16 %v1024
        %v1217 = vunpack.c.l.b16 %v1025
        %v1218 = vunpack.c.l.b16 %v1026
        %v1219 = vunpack.c.l.b16 %v1027
        %v1220 = vunpack.c.l.b16 %v1028
        %v1221 = vunpack.c.l.b16 %v1029
        %v1222 = vunpack.c.l.b16 %v1030
        %v1223 = vunpack.c.l.b16 %v1031
        %v1224 = vunpack.c.l.b16 %v1032
        %v1225 = vunpack.c.l.b16 %v1033
        %v1226 = vunpack.c.l.b16 %v1034
        %v1227 = vunpack.c.l.b16 %v1035
        %v1228 = vunpack.c.l.b16 %v1036
        %v1229 = vunpack.c.l.b16 %v1037
        %v1230 = vunpack.c.l.b16 %v1038
        %v1231 = vunpack.c.l.b16 %v1039
        %v1232 = vunpack.c.l.b16 %v1040
        %v1233 = vunpack.c.l.b16 %v1041
        %v1234 = vunpack.c.l.b16 %v1042
        %v1235 = vunpack.c.l.b16 %v1043
        %v1236 = vunpack.c.l.b16 %v1044
        %v1237 = vunpack.c.l.b16 %v1045
        %v1238 = vunpack.c.l.b16 %v1046
        %v1239 = vunpack.c.l.b16 %v1047
        %v1240 = vunpack.c.l.b16 %v1048
        %v1241 = vunpack.c.l.b16 %v1049
        %v1242 = vunpack.c.l.b16 %v1050
        %v1243 = vunpack.c.l.b16 %v1051
        %v1244 = vunpack.c.l.b16 %v1052
        %v1245 = vunpack.c.l.b16 %v1053
        %v1246 = vunpack.c.l.b16 %v1054
        %v1247 = vunpack.c.l.b16 %v1055
        %v1248 = vunpack.c.l.b16 %v1056
        %v1249 = vunpack.c.l.b16 %v1057
        %v1250 = vunpack.c.l.b16 %v1058
        %v1251 = vunpack.c.l.b16 %v1059
        %v1252 = vunpack.c.l.b16 %v1060
        %v1253 = vunpack.c.l.b16 %v1061
        %v1254 = vunpack.c.l.b16 %v1062
        %v1255 = vunpack.c.l.b16 %v1063
        %v1256 = vunpack.c.l.b16 %v1064
        %v1257 = vunpack.c.l.b16 %v1065
        %v1258 = vunpack.c.l.b16 %v1066
        %v1259 = vunpack.c.l.b16 %v1067
        %v1260 = vunpack.c.l.b16 %v1068
        %v1261 = vunpack.c.l.b16 %v1069
        %v1262 = vunpack.c.l.b16 %v1070
        %v1263 = vunpack.c.l.b16 %v1071
        %v1264 = vunpack.c.l.b16 %v1072
        %v1265 = vunpack.c.l.b16 %v1073
        %v1266 = vunpack.c.l.b16 %v1074
        %v1267 = vunpack.c.l.b16 %v1075
        %v1268 = vunpack.c.l.b16 %v1076
        %v1269 = vunpack.c.l.b16 %v1077
        %v1270 = vunpack.c.l.b16 %v1078
        %v1271 = vunpack.c.l.b16 %v1079
        %v1272 = vunpack.c.l.b16 %v1080
        %v1273 = vunpack.c.l.b16 %v1081
        %v1274 = vunpack.c.l.b16 %v1082
        %v1275 = vunpack.c.l.b16 %v1083
        %v1276 = vunpack.c.l.b16 %v1084
        %v1277 = vunpack.c.l.b16 %v1085
        %v1278 = vunpack.c.l.b16 %v1086
        %v1279 = vunpack.c.l.b16 %v1087
        %v1280 = vunpack.c.l.b16 %v1088
        %v1281 = vunpack.c.l.b16 %v1089
        %v1282 = vunpack.c.l.b16 %v1090
        %v1283 = vpack.c.b16 %v1188, %v1187
        %v1284 = vpack.c.b16 %v1190, %v1189
        %v1285 = vpack.c.b16 %v1192, %v1191
        %v1286 = vpack.c.b16 %v1194, %v1193
        %v1287 = vpack.c.b16 %v1196, %v1195
        %v1288 = vpack.c.b16 %v1198, %v1197
        %v1289 = vpack.c.b16 %v1200, %v1199
        %v1290 = vpack.c.b16 %v1202, %v1201
        %v1291 = vpack.c.b16 %v1204, %v1203
        %v1292 = vpack.c.b16 %v1206, %v1205
        %v1293 = vpack.c.b16 %v1208, %v1207
        %v1294 = vpack.c.b16 %v1210, %v1209
        %v1295 = vpack.c.b16 %v1212, %v1211
        %v1296 = vpack.c.b16 %v1214, %v1213
        %v1297 = vpack.c.b16 %v1216, %v1215
        %v1298 = vpack.c.b16 %v1218, %v1217
        %v1299 = vpack.c.b16 %v1220, %v1219
        %v1300 = vpack.c.b16 %v1222, %v1221
        %v1301 = vpack.c.b16 %v1224, %v1223
        %v1302 = vpack.c.b16 %v1226, %v1225
        %v1303 = vpack.c.b16 %v1228, %v1227
        %v1304 = vpack.c.b16 %v1230, %v1229
        %v1305 = vpack.c.b16 %v1232, %v1231
        %v1306 = vpack.c.b16 %v1234, %v1233
        %v1307 = vpack.c.b16 %v1236, %v1235
        %v1308 = vpack.c.b16 %v1238, %v1237
        %v1309 = vpack.c.b16 %v1240, %v1239
        %v1310 = vpack.c.b16 %v1242, %v1241
        %v1311 = vpack.c.b16 %v1244, %v1243
        %v1312 = vpack.c.b16 %v1246, %v1245
        %v1313 = vpack.c.b16 %v1248, %v1247
        %v1314 = vpack.c.b16 %v1250, %v1249
        %v1315 = vpack.c.b16 %v1252, %v1251
        %v1316 = vpack.c.b16 %v1254, %v1253
        %v1317 = vpack.c.b16 %v1256, %v1255
        %v1318 = vpack.c.b16 %v1258, %v1257
        %v1319 = vpack.c.b16 %v1260, %v1259
        %v1320 = vpack.c.b16 %v1262, %v1261
        %v1321 = vpack.c.b16 %v1264, %v1263
        %v1322 = vpack.c.b16 %v1266, %v1265
        %v1323 = vpack.c.b16 %v1268, %v1267
        %v1324 = vpack.c.b16 %v1270, %v1269
        %v1325 = vpack.c.b16 %v1272, %v1271
        %v1326 = vpack.c.b16 %v1274, %v1273
        %v1327 = vpack.c.b16 %v1276, %v1275
        %v1328 = vpack.c.b16 %v1278, %v1277
        %v1329 = vpack.c.b16 %v1280, %v1279
        %v1330 = vpack.c.b16 %v1282, %v1281
        %1379 = vmatprep.subr.bf16.mxu0 0
        %1380 = vmatpush1.bf16.msra.mxu0 %v1283
        %1381 = vmatprep.subr.bf16.mxu0 0
        %1382 = vmatpush1.bf16.msra.mxu0 %v1284
        %1383 = vmatprep.subr.bf16.mxu0 0
        %1384 = vmatpush1.bf16.msra.mxu0 %v1285
        %1385 = vmatprep.subr.bf16.mxu0 0
        %1386 = vmatpush1.bf16.msra.mxu0 %v1286
        %1387 = vmatprep.subr.bf16.mxu0 0
        %1388 = vmatpush1.bf16.msra.mxu0 %v1287
        %1389 = vmatprep.subr.bf16.mxu0 0
        %1390 = vmatpush1.bf16.msra.mxu0 %v1288
        %1391 = vmatprep.subr.bf16.mxu0 0
        %1392 = vmatpush1.bf16.msra.mxu0 %v1289
        %1393 = vmatprep.subr.bf16.mxu0 0
        %1394 = vmatpush1.bf16.msra.mxu0 %v1290
        %1395 = vmatprep.subr.bf16.mxu0 0
        %1396 = vmatpush1.bf16.msra.mxu0 %v1291
        %1397 = vmatprep.subr.bf16.mxu0 0
        %1398 = vmatpush1.bf16.msra.mxu0 %v1292
        %1399 = vmatprep.subr.bf16.mxu0 0
        %1400 = vmatpush1.bf16.msra.mxu0 %v1293
        %1401 = vmatprep.subr.bf16.mxu0 0
        %1402 = vmatpush1.bf16.msra.mxu0 %v1294
        %1403 = vmatprep.subr.bf16.mxu0 0
        %1404 = vmatpush1.bf16.msra.mxu0 %v1295
        %1405 = vmatprep.subr.bf16.mxu0 0
        %1406 = vmatpush1.bf16.msra.mxu0 %v1296
        %1407 = vmatprep.subr.bf16.mxu0 0
        %1408 = vmatpush1.bf16.msra.mxu0 %v1297
        %1409 = vmatprep.subr.bf16.mxu0 0
        %1410 = vmatpush1.bf16.msra.mxu0 %v1298
        %1411 = vmatprep.mubr.bf16.mxu0 %v954
        %1412 = vmatmul.mubr.bf16.gmra.mrb[0].mxu0 %v953
        %v1413 = vpop.f32.mrb[0].mxu0
        %v1414 = vadd.f32 0.0, %v1413
        %v1415 = vpop.f32.mrb[0].mxu0
        %v1416 = vpop.f32.mrb[0].mxu0
        %v1417 = vadd.f32 0.0, %v1416
        %v1418 = vpop.f32.mrb[0].mxu0
        %1419 = vdwg.mxu0
        %1420 = vmatprep.subr.bf16.mxu0 0
        %1421 = vmatpush1.bf16.msra.mxu0 %v1299
        %1422 = vmatprep.subr.bf16.mxu0 0
        %1423 = vmatpush1.bf16.msra.mxu0 %v1300
        %1424 = vmatprep.subr.bf16.mxu0 0
        %1425 = vmatpush1.bf16.msra.mxu0 %v1301
        %1426 = vmatprep.subr.bf16.mxu0 0
        %1427 = vmatpush1.bf16.msra.mxu0 %v1302
        %1428 = vmatprep.subr.bf16.mxu0 0
        %1429 = vmatpush1.bf16.msra.mxu0 %v1303
        %1430 = vmatprep.subr.bf16.mxu0 0
        %1431 = vmatpush1.bf16.msra.mxu0 %v1304
        %1432 = vmatprep.subr.bf16.mxu0 0
        %1433 = vmatpush1.bf16.msra.mxu0 %v1305
        %1434 = vmatprep.subr.bf16.mxu0 0
        %1435 = vmatpush1.bf16.msra.mxu0 %v1306
        %1436 = vmatprep.subr.bf16.mxu0 0
        %1437 = vmatpush1.bf16.msra.mxu0 %v1307
        %1438 = vmatprep.subr.bf16.mxu0 0
        %1439 = vmatpush1.bf16.msra.mxu0 %v1308
        %1440 = vmatprep.subr.bf16.mxu0 0
        %1441 = vmatpush1.bf16.msra.mxu0 %v1309
        %1442 = vmatprep.subr.bf16.mxu0 0
        %1443 = vmatpush1.bf16.msra.mxu0 %v1310
        %1444 = vmatprep.subr.bf16.mxu0 0
        %1445 = vmatpush1.bf16.msra.mxu0 %v1311
        %1446 = vmatprep.subr.bf16.mxu0 0
        %1447 = vmatpush1.bf16.msra.mxu0 %v1312
        %1448 = vmatprep.subr.bf16.mxu0 0
        %1449 = vmatpush1.bf16.msra.mxu0 %v1313
        %1450 = vmatprep.subr.bf16.mxu0 0
        %1451 = vmatpush1.bf16.msra.mxu0 %v1314
        %1452 = vmatprep.mubr.bf16.mxu0 %v980
        %1453 = vmatmul.mubr.bf16.gmra.mrb[0].mxu0 %v968
        %v1454 = vpop.f32.mrb[0].mxu0
        %v1455 = vadd.f32 %v1414, %v1454
        %v1456 = vpop.f32.mrb[0].mxu0
        %v1457 = vpop.f32.mrb[0].mxu0
        %v1458 = vadd.f32 %v1417, %v1457
        %v1459 = vpop.f32.mrb[0].mxu0
        %1460 = vdwg.mxu0
        %1461 = vmatprep.subr.bf16.mxu0 0
        %1462 = vmatpush1.bf16.msra.mxu0 %v1315
        %1463 = vmatprep.subr.bf16.mxu0 0
        %1464 = vmatpush1.bf16.msra.mxu0 %v1316
        %1465 = vmatprep.subr.bf16.mxu0 0
        %1466 = vmatpush1.bf16.msra.mxu0 %v1317
        %1467 = vmatprep.subr.bf16.mxu0 0
        %1468 = vmatpush1.bf16.msra.mxu0 %v1318
        %1469 = vmatprep.subr.bf16.mxu0 0
        %1470 = vmatpush1.bf16.msra.mxu0 %v1319
        %1471 = vmatprep.subr.bf16.mxu0 0
        %1472 = vmatpush1.bf16.msra.mxu0 %v1320
        %1473 = vmatprep.subr.bf16.mxu0 0
        %1474 = vmatpush1.bf16.msra.mxu0 %v1321
        %1475 = vmatprep.subr.bf16.mxu0 0
        %1476 = vmatpush1.bf16.msra.mxu0 %v1322
        %1477 = vmatprep.subr.bf16.mxu0 0
        %1478 = vmatpush1.bf16.msra.mxu0 %v1323
        %1479 = vmatprep.subr.bf16.mxu0 0
        %1480 = vmatpush1.bf16.msra.mxu0 %v1324
        %1481 = vmatprep.subr.bf16.mxu0 0
        %1482 = vmatpush1.bf16.msra.mxu0 %v1325
        %1483 = vmatprep.subr.bf16.mxu0 0
        %1484 = vmatpush1.bf16.msra.mxu0 %v1326
        %1485 = vmatprep.subr.bf16.mxu0 0
        %1486 = vmatpush1.bf16.msra.mxu0 %v1327
        %1487 = vmatprep.subr.bf16.mxu0 0
        %1488 = vmatpush1.bf16.msra.mxu0 %v1328
        %1489 = vmatprep.subr.bf16.mxu0 0
        %1490 = vmatpush1.bf16.msra.mxu0 %v1329
        %1491 = vmatprep.subr.bf16.mxu0 0
        %1492 = vmatpush1.bf16.msra.mxu0 %v1330
        %1493 = vmatprep.mubr.bf16.mxu0 %v992
        %1494 = vmatmul.mubr.bf16.gmra.mrb[0].mxu0 %v989
        %v1495 = vpop.f32.mrb[0].mxu0
        %v1496 = vadd.f32 %v1455, %v1495
        %v1497 = vpop.f32.mrb[0].mxu0
        %v1498 = vpop.f32.mrb[0].mxu0
        %v1499 = vadd.f32 %v1458, %v1498
        %v1500 = vpop.f32.mrb[0].mxu0
        %1501 = vdwg.mxu0
        %v1502 = vld [vmem:[%s5] sm:$0x1]
        %v1504 = vlaneseq
        %v1505 = vshrl.u32 %v1504, 7
        %v1506 = vsub.s32 0, %v1505
        %v1507 = vrot.slane %v1502, %v1506
        %v1509 = vmul.f32 %v1496, %v1507
        %v1510 = vmul.f32 %v1499, %v1507
        %v1511 = vld [vmem:[%s6] sm:$0x1]
        %v1513 = vlaneseq
        %v1514 = vshrl.u32 %v1513, 7
        %v1515 = vsub.s32 0, %v1514
        %v1516 = vrot.slane %v1511, %v1515
        %v1518 = vadd.f32 %v1509, %v1516
        %v1519 = vadd.f32 %v1510, %v1516
        %v1520 = vadd.f32 %v1518, %v329
        %v1521 = vadd.f32 %v1519, %v330
        %v1522 = vmax.f32 %v1520, 0.0
        %v1523 = vmax.f32 %v1521, 0.0
        %1524 = vst [vmem:[%s325] sm:$0xff] %v1522
        %1525 = vst [vmem:[%s325 + $0x8] sm:$0xff] %v1523
        %s1526 = sand.u32 %s185, 1
        %s1527 = scalar_lea.sflag [#allocation4], %s1526
        %s1528 = sand.u32 %s185, 1
        %s1529 = smul.addr %s1528, 16
        %s1530 = scalar_lea.vmem [#allocation8], %s1529
        // Predicated region
        $region61: #{tpu_custom_call.1} parent=47 // pred_check
          %p1531 = pneg %p195
        $region62: #{tpu_custom_call.1} parent=47 // pred_check_branch
          %1533 = sbr.rel (%p1531) target = $region64
        $region63: #{tpu_custom_call.1} parent=47 // pred_region
          %s1534 = smul.u32 2, %s25
          %s1536 = ssub.s32 256, 256
          %1537 = vsyncadd %s1527, %s1536
          %s1538 = smul.addr %s1534, 128
          %s1539 = scalar_lea.hbm %s7, %s1538
          %s1540 = sshll.u32 %s1530, 4
          %s1541 = int_to_ptr.vmem [resolvable:$true] %s1540
          %1546 = dma.vmem_to_hbm [thread:$0]  %s1541, 256, %s1539, %s1527, 128, 128, 8
        $region64: #{tpu_custom_call.1} parent=47 // pred_fallthru
          _
      $region48: #{tpu_custom_call.1} parent=5 // pred_fallthru
        _
      %p1547 = scmp.le.s32.totalorder 2, %s20
      // Predicated region
      $region65: #{tpu_custom_call.1} parent=5 // pred_check
        %p1548 = pneg %p1547
      $region66: #{tpu_custom_call.1} parent=5 // pred_check_branch
        %1550 = sbr.rel (%p1548) target = $region68
      $region67: #{tpu_custom_call.1} parent=5 // pred_region
        %s1551 = ssub.s32 %s20, 2
        // Predicated region
        $region69: #{tpu_custom_call.1} parent=67 // pred_check
          %p1552 = pneg %p201
        $region70: #{tpu_custom_call.1} parent=67 // pred_check_branch
          %1554 = sbr.rel (%p1552) target = $region72
        $region71: #{tpu_custom_call.1} parent=67 // pred_region
          %s1555 = sand.u32 %s186, 1
          %s1556 = scalar_lea.sflag [#allocation4], %s1555
          %s1557 = sand.u32 %s186, 1
          %s1558 = smul.addr %s1557, 16
          %s1559 = scalar_lea.vmem [#allocation8], %s1558
          %1560 = dma.done %s1556, 256
        $region72: #{tpu_custom_call.1} parent=67 // pred_fallthru
          _
      $region68: #{tpu_custom_call.1} parent=5 // pred_fallthru
        _
    $region6: #{tpu_custom_call.1} parent=1 // loop_footer
      %s24 = sadd.s32 1, %s20
    $region7: #{tpu_custom_call.1} parent=1 // loop_footer_branch
      %19 = sbr.rel target = $region3
    $region8: #{tpu_custom_call.1} parent=1 // loop_exit
      _
    %1561 = vsyncpa [#allocation3], 1
    %s1562 = scalar_lea.sflag [#allocation3], 1
    %1563 = vsyncpa %s1562, 1
    %1564 = vsyncpa [#allocation6], 1
    %1565 = vsyncpa [#allocation4], 1
    %s1566 = scalar_lea.sflag [#allocation4], 1
    %1567 = vsyncpa %s1566, 1

</llo_original>
